<compile_context>
chip_gen: v6e
topology: v6e:2x2x1
jax: 0.10.0
libtpu: 0.0.40
codegen_flags: <defaults>
</compile_context>

<pallas_src>
import functools
import math

import jax
import jax.numpy as jnp
from jax import lax
from jax.experimental import pallas as pl
from jax.experimental.pallas import tpu as pltpu

NFEAT = 1024
NHID = 256
NCLASS = 12  # 'UCF-HMDB'


def _gcn_kernel(x_ref, w1_ref, b1_ref, w2_ref, b2_ref, out_ref, *, scale, inv_n):
    # x_ref:  (Bt, N, D)  Bt graphs, N nodes (video segments) each
    # w1_ref: (D, H), b1_ref: (1, H)
    # w2_ref: (H, C), b2_ref: (1, C)
    # out_ref:(Bt, C)
    x = x_ref[...]                                   # (Bt, N, D)
    bt, n, d = x.shape
    h = w1_ref.shape[1]

    # --- adjacency: per-graph row-softmax of scaled feature similarity ------
    # Contract the feature axis of x against itself (batched dot_general) so
    # no transpose of x is materialized.
    s = lax.dot_general(
        x, x,
        dimension_numbers=(((2,), (2,)), ((0,), (0,))),
        preferred_element_type=jnp.float32) * scale  # (Bt, N, N)
    s = s - jnp.max(s, axis=-1, keepdims=True)
    e = jnp.exp(s)
    # approx=True -> EUP vrcp slot (otherwise idle); validated vs. reference
    # below.
    adj = e * pl.reciprocal(jnp.sum(e, axis=-1, keepdims=True), approx=True)

    # --- layer 1: relu(adj @ (x @ W1) + b1) ---------------------------------
    # Flatten (Bt, N, D) -> (Bt*N, D) so the dominant GEMM fills the MXU rows.
    xw1 = jnp.dot(x.reshape(bt * n, d), w1_ref[...],
                  preferred_element_type=jnp.float32).reshape(bt, n, h)
    h1 = lax.dot_general(
        adj, xw1,
        dimension_numbers=(((2,), (1,)), ((0,), (0,))),
        preferred_element_type=jnp.float32) + b1_ref[...]
    h1 = jnp.maximum(h1, 0.0)          # dropout(p=0.1) is identity at eval

    # --- layer 2 + mean-pool, folded ----------------------------------------
    # mean_n(adj @ h1 @ W2 + b2) == (mean_n(adj) @ h1) @ W2 + b2
    col = jnp.sum(adj, axis=1) * inv_n               # (Bt, N) = mean_n(adj)
    pooled = jnp.sum(col[:, :, None] * h1, axis=1)   # (Bt, H)

    out_ref[...] = (jnp.dot(pooled, w2_ref[...],
                            preferred_element_type=jnp.float32)
                    + b2_ref[...])                   # (Bt, C)


def _choose_bt(B, N):
    """Graphs per grid step: fill the MXU M dim (~Bt*N rows) while keeping the
    x block small (Bt*N <= 512 rows = 2 MiB fp32 at D=1024, double-buffered
    well inside even v7x's 64 MiB VMEM)."""
    if B * N <= 512:
        return B                      # whole batch in a single grid step
    best = 1
    for d in range(1, B + 1):
        if B % d == 0 and d * N <= 512 and (d % 8 == 0 or d == B):
            best = max(best, d)
    return best


def graph_model_forward(x, w1, b1, w2, b2):
    """x: [B, N, D] float32 -> [B, C] float32."""
    B, N, D = x.shape
    H = w1.shape[1]
    C = w2.shape[1]
    bt = _choose_bt(B, N)
    assert B % bt == 0

    kernel = functools.partial(_gcn_kernel,
                               scale=1.0 / math.sqrt(D),
                               inv_n=1.0 / N)

    return pl.pallas_call(
        kernel,
        out_shape=jax.ShapeDtypeStruct((B, C), jnp.float32),
        grid_spec=pltpu.PrefetchScalarGridSpec(
            num_scalar_prefetch=0,
            grid=(B // bt,),
            in_specs=[
                pl.BlockSpec((bt, N, D), lambda g: (g, 0, 0)),  # x tile (Bt graphs)
                pl.BlockSpec((D, H), lambda g: (0, 0)),          # W1 (DMA'd once)
                pl.BlockSpec((1, H), lambda g: (0, 0)),          # b1
                pl.BlockSpec((H, C), lambda g: (0, 0)),          # W2
                pl.BlockSpec((1, C), lambda g: (0, 0)),          # b2
            ],
            out_specs=pl.BlockSpec((bt, C), lambda g: (g, 0)),   # dense 2-D output
        ),
        compiler_params=pltpu.CompilerParams(
            dimension_semantics=("parallel",)),   # batch axis shardable across TCs
    )(x, w1, b1, w2, b2)


def _reference_forward(x, w1, b1, w2, b2):
    scale = 1.0 / math.sqrt(x.shape[-1])
    s = jnp.einsum("bnd,bmd->bnm", x, x) * scale
    adj = jax.nn.softmax(s, axis=-1)
    h1 = jax.nn.relu(jnp.einsum("bnm,bmh->bnh", adj, x @ w1) + b1)
    y = jnp.einsum("bnm,bmc->bnc", adj, h1 @ w2) + b2
    return jnp.mean(y, axis=1)


if __name__ == "__main__":
    key = jax.random.PRNGKey(0)
    kx, k1, k2, k3, k4 = jax.random.split(key, 5)

    B, N = 2, 8  # small: 2 videos, 8 segment-nodes each
    x = jax.random.normal(kx, (B, N, NFEAT), dtype=jnp.float32)

    # Deterministic Glorot-style init for the two GraphConvolution layers.
    w1 = jax.random.uniform(k1, (NFEAT, NHID), jnp.float32,
                            minval=-1.0, maxval=1.0) / math.sqrt(NFEAT)
    b1 = jax.random.uniform(k2, (1, NHID), jnp.float32,
                            minval=-1.0, maxval=1.0) / math.sqrt(NHID)
    w2 = jax.random.uniform(k3, (NHID, NCLASS), jnp.float32,
                            minval=-1.0, maxval=1.0) / math.sqrt(NHID)
    b2 = jax.random.uniform(k4, (1, NCLASS), jnp.float32,
                            minval=-1.0, maxval=1.0) / math.sqrt(NCLASS)

    out = graph_model_forward(x, w1, b1, w2, b2)
    out = jax.block_until_ready(out)

    ref = _reference_forward(x, w1, b1, w2, b2)
    assert out.shape == (B, NCLASS)
    # 1e-3 tolerance covers the approx (EUP) softmax reciprocal; well within
    # what matters for a mean-pooled classifier head.
    assert jnp.allclose(out, ref, atol=1e-3, rtol=1e-3), "mismatch vs JAX reference"

    print("KERNEL_OK")
</pallas_src>

<mosaic_0001>
module attributes {stable_mosaic.version = 11 : i64} {
  func.func @_gcn_kernel(%arg0: i32, %arg1: memref<2x8x1024xf32, #tpu.memory_space<vmem>>, %arg2: memref<1024x256xf32, #tpu.memory_space<vmem>>, %arg3: memref<1x256xf32, #tpu.memory_space<vmem>>, %arg4: memref<256x12xf32, #tpu.memory_space<vmem>>, %arg5: memref<1x12xf32, #tpu.memory_space<vmem>>, %arg6: memref<2x12xf32, #tpu.memory_space<vmem>>) attributes {dimension_semantics = [#tpu.dimension_semantics<parallel>], iteration_bounds = array<i64: 1>, scalar_prefetch = 0 : i64, scratch_operands = 0 : i64, tpu.core_type = #tpu.core_type<tc>, window_params = [{transform_indices = @transform_0, window_bounds = array<i64: 2, 8, 1024>}, {pipeline_mode = #tpu.pipeline_mode<synchronous>, transform_indices = @transform_1, window_bounds = array<i64: 1024, 256>}, {pipeline_mode = #tpu.pipeline_mode<synchronous>, transform_indices = @transform_2, window_bounds = array<i64: 1, 256>}, {pipeline_mode = #tpu.pipeline_mode<synchronous>, transform_indices = @transform_3, window_bounds = array<i64: 256, 12>}, {pipeline_mode = #tpu.pipeline_mode<synchronous>, transform_indices = @transform_4, window_bounds = array<i64: 1, 12>}, {transform_indices = @transform_5, window_bounds = array<i64: 2, 12>}]} {
    %c0 = arith.constant 0 : index
    %c0_0 = arith.constant 0 : index
    %c0_1 = arith.constant 0 : index
    %0 = vector.load %arg1[%c0, %c0_0, %c0_1] : memref<2x8x1024xf32, #tpu.memory_space<vmem>>, vector<2x8x1024xf32>
    %cst = arith.constant dense<0.000000e+00> : vector<2x8x8xf32>
    %1 = tpu.matmul %0, %0, %cst {dimension_numbers = #tpu.dot_dimension_numbers<[2], [2], [1], [1], [0, 0, 0, 1, 1, 1], [0], [0]>} : vector<2x8x1024xf32>, vector<2x8x1024xf32>, vector<2x8x8xf32> -> vector<2x8x8xf32>
    %cst_2 = arith.constant 3.125000e-02 : f32
    %2 = vector.broadcast %cst_2 : f32 to vector<2x8x8xf32>
    %3 = arith.mulf %1, %2 : vector<2x8x8xf32>
    %cst_3 = arith.constant dense<0xFF800000> : vector<2x8xf32>
    %4 = vector.multi_reduction <maximumf>, %3, %cst_3 [2] : vector<2x8x8xf32> to vector<2x8xf32>
    %5 = vector.shape_cast %4 : vector<2x8xf32> to vector<2x8x1xf32>
    %6 = vector.broadcast %5 : vector<2x8x1xf32> to vector<2x8x8xf32>
    %7 = arith.subf %3, %6 : vector<2x8x8xf32>
    %8 = math.exp %7 : vector<2x8x8xf32>
    %cst_4 = arith.constant dense<0.000000e+00> : vector<2x8xf32>
    %9 = vector.multi_reduction <add>, %8, %cst_4 [2] : vector<2x8x8xf32> to vector<2x8xf32>
    %10 = vector.shape_cast %9 : vector<2x8xf32> to vector<2x8x1xf32>
    %11 = tpu.reciprocal %10 {approx = true} : vector<2x8x1xf32> -> vector<2x8x1xf32>
    %12 = vector.broadcast %11 : vector<2x8x1xf32> to vector<2x8x8xf32>
    %13 = arith.mulf %8, %12 : vector<2x8x8xf32>
    %14 = vector.shape_cast %0 : vector<2x8x1024xf32> to vector<16x1024xf32>
    %c0_5 = arith.constant 0 : index
    %c0_6 = arith.constant 0 : index
    %15 = vector.load %arg2[%c0_5, %c0_6] : memref<1024x256xf32, #tpu.memory_space<vmem>>, vector<1024x256xf32>
    %cst_7 = arith.constant dense<0.000000e+00> : vector<16x256xf32>
    %16 = tpu.matmul %14, %15, %cst_7 {dimension_numbers = #tpu.dot_dimension_numbers<[1], [0], [0], [1], [0, 0, 1, 1], [], []>} : vector<16x1024xf32>, vector<1024x256xf32>, vector<16x256xf32> -> vector<16x256xf32>
    %17 = vector.shape_cast %16 : vector<16x256xf32> to vector<2x8x256xf32>
    %cst_8 = arith.constant dense<0.000000e+00> : vector<2x8x256xf32>
    %18 = tpu.matmul %13, %17, %cst_8 {dimension_numbers = #tpu.dot_dimension_numbers<[2], [1], [1], [2], [0, 0, 0, 1, 1, 2], [0], [0]>} : vector<2x8x8xf32>, vector<2x8x256xf32>, vector<2x8x256xf32> -> vector<2x8x256xf32>
    %c0_9 = arith.constant 0 : index
    %c0_10 = arith.constant 0 : index
    %19 = vector.load %arg3[%c0_9, %c0_10] : memref<1x256xf32, #tpu.memory_space<vmem>>, vector<1x256xf32>
    %20 = vector.shape_cast %19 : vector<1x256xf32> to vector<1x1x256xf32>
    %21 = vector.broadcast %20 : vector<1x1x256xf32> to vector<2x8x256xf32>
    %22 = arith.addf %18, %21 : vector<2x8x256xf32>
    %cst_11 = arith.constant 0.000000e+00 : f32
    %23 = vector.broadcast %cst_11 : f32 to vector<2x8x256xf32>
    %24 = arith.maximumf %22, %23 : vector<2x8x256xf32>
    %cst_12 = arith.constant dense<0.000000e+00> : vector<2x8xf32>
    %25 = vector.multi_reduction <add>, %13, %cst_12 [1] : vector<2x8x8xf32> to vector<2x8xf32>
    %cst_13 = arith.constant 1.250000e-01 : f32
    %26 = vector.broadcast %cst_13 : f32 to vector<2x8xf32>
    %27 = arith.mulf %25, %26 : vector<2x8xf32>
    %28 = vector.shape_cast %27 : vector<2x8xf32> to vector<2x8x1xf32>
    %29 = vector.broadcast %28 : vector<2x8x1xf32> to vector<2x8x256xf32>
    %30 = arith.mulf %29, %24 : vector<2x8x256xf32>
    %cst_14 = arith.constant dense<0.000000e+00> : vector<2x256xf32>
    %31 = vector.multi_reduction <add>, %30, %cst_14 [1] : vector<2x8x256xf32> to vector<2x256xf32>
    %c0_15 = arith.constant 0 : index
    %c0_16 = arith.constant 0 : index
    %32 = vector.load %arg4[%c0_15, %c0_16] : memref<256x12xf32, #tpu.memory_space<vmem>>, vector<256x12xf32>
    %cst_17 = arith.constant dense<0.000000e+00> : vector<2x12xf32>
    %33 = tpu.matmul %31, %32, %cst_17 {dimension_numbers = #tpu.dot_dimension_numbers<[1], [0], [0], [1], [0, 0, 1, 1], [], []>} : vector<2x256xf32>, vector<256x12xf32>, vector<2x12xf32> -> vector<2x12xf32>
    %c0_18 = arith.constant 0 : index
    %c0_19 = arith.constant 0 : index
    %34 = vector.load %arg5[%c0_18, %c0_19] : memref<1x12xf32, #tpu.memory_space<vmem>>, vector<1x12xf32>
    %35 = vector.broadcast %34 : vector<1x12xf32> to vector<2x12xf32>
    %36 = arith.addf %33, %35 : vector<2x12xf32>
    %c0_20 = arith.constant 0 : index
    %c0_21 = arith.constant 0 : index
    %37 = vector.load %arg6[%c0_20, %c0_21] : memref<2x12xf32, #tpu.memory_space<vmem>>, vector<2x12xf32>
    tpu.vector_store %arg6[%c0_20, %c0_21], %36 {strides = array<i32>} : memref<2x12xf32, #tpu.memory_space<vmem>>, vector<2x12xf32>,
    return
  }
  func.func @transform_0(%arg0: i32) -> (i32, i32, i32) {
    %c0_i32 = arith.constant 0 : i32
    %c0_i32_0 = arith.constant 0 : i32
    %c0_i32_1 = arith.constant 0 : i32
    return %arg0, %c0_i32, %c0_i32_0 : i32, i32, i32
  }
  func.func @transform_1(%arg0: i32) -> (i32, i32) {
    %c0_i32 = arith.constant 0 : i32
    %c0_i32_0 = arith.constant 0 : i32
    %c0_i32_1 = arith.constant 0 : i32
    return %c0_i32, %c0_i32_0 : i32, i32
  }
  func.func @transform_2(%arg0: i32) -> (i32, i32) {
    %c0_i32 = arith.constant 0 : i32
    %c0_i32_0 = arith.constant 0 : i32
    %c0_i32_1 = arith.constant 0 : i32
    return %c0_i32, %c0_i32_0 : i32, i32
  }
  func.func @transform_3(%arg0: i32) -> (i32, i32) {
    %c0_i32 = arith.constant 0 : i32
    %c0_i32_0 = arith.constant 0 : i32
    %c0_i32_1 = arith.constant 0 : i32
    return %c0_i32, %c0_i32_0 : i32, i32
  }
  func.func @transform_4(%arg0: i32) -> (i32, i32) {
    %c0_i32 = arith.constant 0 : i32
    %c0_i32_0 = arith.constant 0 : i32
    %c0_i32_1 = arith.constant 0 : i32
    return %c0_i32, %c0_i32_0 : i32, i32
  }
  func.func @transform_5(%arg0: i32) -> (i32, i32) {
    %c0_i32 = arith.constant 0 : i32
    %c0_i32_0 = arith.constant 0 : i32
    return %arg0, %c0_i32 : i32, i32
  }
}

</mosaic_0001>

<llo_original>
// kernel: tpu_custom_call.1
$region0: #{tpu_custom_call.1}
  #allocation0 [shape = 'u32[]', space=smem, size = 0x4, offset = 0x4, fixed_abs, tag = 'smem constant byte address 0x4 - core index']
  #allocation1 [shape = 'u32[144,128]{1,0:T(1,128)}', space=vmem, size = 0x12000, scoped, tag = 'internal scratch']
  %s0 = inlined_call_operand.vmem [shape: f32[2,8,1024], index: 0, kind: input, shape index: {}]
  %s1 = inlined_call_operand.hbm [shape: f32[1024,256], index: 1, kind: input, shape index: {}]
  %s2 = inlined_call_operand.vmem [shape: f32[1,256], index: 2, kind: input, shape index: {}]
  %s3 = inlined_call_operand.vmem [shape: f32[256,12], index: 3, kind: input, shape index: {}]
  %s4 = inlined_call_operand.vmem [shape: f32[1,12], index: 4, kind: input, shape index: {}]
  %s5 = inlined_call_operand.hbm [shape: f32[2,12], index: 5, kind: output, shape index: {}]
  %s6 = sld [smem:[#allocation0]]
  $region34: #{tpu_custom_call.1} parent=0
    _
  %s8 = ssub.s32 1, %s6
  %s9 = scalar_select 0, %s8, %s6
  $region1: #{tpu_custom_call.1} parent=0
    #allocation2 [shape = 'u8[1048576]{0}', space=vmem, size = 0x100000, scoped, tag = 'input window, operand 1, single buffered']
    #allocation3 [shape = 's32[1]{0}', space=sflag, size = 0x4, scoped, tag = 'scoped memory for tpu_custom_call.1']
    #allocation4 [shape = 's32[1]{0}', space=sflag, size = 0x4, scoped, tag = 'scoped memory for tpu_custom_call.1']
    #allocation5 [shape = 'u8[1024]{0}', space=vmem, size = 0x400, scoped, tag = 'output window, operand 0, single buffered']
    %10 = vsyncpa [#allocation3], 0
    %11 = vsyncpa [#allocation4], 0
    // Predicated region
    $region2: #{tpu_custom_call.1} parent=1 // pred_check
      _
    $region3: #{tpu_custom_call.1} parent=1 // pred_check_branch
      %13 = sbr.rel (0) target = $region5
    $region4: #{tpu_custom_call.1} parent=1 // pred_region
      _
    $region5: #{tpu_custom_call.1} parent=1 // pred_fallthru
      _
    // Predicated region
    $region6: #{tpu_custom_call.1} parent=1 // pred_check
      _
    $region7: #{tpu_custom_call.1} parent=1 // pred_check_branch
      %15 = sbr.rel (0) target = $region9
    $region8: #{tpu_custom_call.1} parent=1 // pred_region
      %s17 = ssub.s32 32768, 32768
      %18 = vsyncadd [#allocation3], %s17
      %s19 = sshll.u32 [#allocation2], 4
      %s20 = int_to_ptr.vmem [resolvable:$true] %s19
      %25 = dma.hbm_to_vmem [thread:$0]  %s1, 32768, %s20, [#allocation3], 256, 256, 16
    $region9: #{tpu_custom_call.1} parent=1 // pred_fallthru
      _
    // Predicated region
    $region10: #{tpu_custom_call.1} parent=1 // pred_check
      _
    $region11: #{tpu_custom_call.1} parent=1 // pred_check_branch
      %27 = sbr.rel (0) target = $region13
    $region12: #{tpu_custom_call.1} parent=1 // pred_region
      _
    $region13: #{tpu_custom_call.1} parent=1 // pred_fallthru
      _
    // Predicated region
    $region14: #{tpu_custom_call.1} parent=1 // pred_check
      _
    $region15: #{tpu_custom_call.1} parent=1 // pred_check_branch
      %29 = sbr.rel (0) target = $region17
    $region16: #{tpu_custom_call.1} parent=1 // pred_region
      _
    $region17: #{tpu_custom_call.1} parent=1 // pred_fallthru
      _
    // Predicated region
    $region18: #{tpu_custom_call.1} parent=1 // pred_check
      _
    $region19: #{tpu_custom_call.1} parent=1 // pred_check_branch
      %31 = sbr.rel (0) target = $region21
    $region20: #{tpu_custom_call.1} parent=1 // pred_region
      _
    $region21: #{tpu_custom_call.1} parent=1 // pred_fallthru
      _
    // Predicated region
    $region22: #{tpu_custom_call.1} parent=1 // pred_check
      _
    $region23: #{tpu_custom_call.1} parent=1 // pred_check_branch
      %33 = sbr.rel (0) target = $region25
    $region24: #{tpu_custom_call.1} parent=1 // pred_region
      %34 = dma.done [#allocation3], 32768
    $region25: #{tpu_custom_call.1} parent=1 // pred_fallthru
      _
    %v35 = vld [vmem:[%s0] sm:$0xff]
    %v36 = vld [vmem:[%s0 + $0x8] sm:$0xff]
    %v37 = vld [vmem:[%s0 + $0x10] sm:$0xff]
    %v38 = vld [vmem:[%s0 + $0x18] sm:$0xff]
    %v39 = vld [vmem:[%s0 + $0x20] sm:$0xff]
    %v40 = vld [vmem:[%s0 + $0x28] sm:$0xff]
    %v41 = vld [vmem:[%s0 + $0x30] sm:$0xff]
    %v42 = vld [vmem:[%s0 + $0x38] sm:$0xff]
    %v43 = vld [vmem:[%s0 + $0x40] sm:$0xff]
    %v44 = vld [vmem:[%s0 + $0x48] sm:$0xff]
    %v45 = vld [vmem:[%s0 + $0x50] sm:$0xff]
    %v46 = vld [vmem:[%s0 + $0x58] sm:$0xff]
    %v47 = vld [vmem:[%s0 + $0x60] sm:$0xff]
    %v48 = vld [vmem:[%s0 + $0x68] sm:$0xff]
    %v49 = vld [vmem:[%s0 + $0x70] sm:$0xff]
    %v50 = vld [vmem:[%s0 + $0x78] sm:$0xff]
    %51 = vmatprep.subr.mxu0 0.0
    %52 = vmatpush1.xpose.msra.mxu0 0.0
    %53 = vmatprep.subr.mxu0 0.0
    %54 = vmatpush1.xpose.msra.mxu0 0.0
    %55 = vmatprep.subr.mxu0 0.0
    %56 = vmatpush1.xpose.msra.mxu0 0.0
    %57 = vmatprep.subr.mxu0 0.0
    %58 = vmatpush1.xpose.msra.mxu0 0.0
    %59 = vmatprep.subr.mxu0 0.0
    %60 = vmatpush1.xpose.msra.mxu0 0.0
    %61 = vmatprep.subr.mxu0 0.0
    %62 = vmatpush1.xpose.msra.mxu0 0.0
    %63 = vmatprep.subr.mxu0 0.0
    %64 = vmatpush1.xpose.msra.mxu0 0.0
    %65 = vmatprep.subr.mxu0 0.0
    %66 = vmatpush1.xpose.msra.mxu0 0.0
    %67 = vmatprep.subr.mxu0 0.0
    %68 = vmatpush1.xpose.msra.mxu0 0.0
    %69 = vmatprep.subr.mxu0 0.0
    %70 = vmatpush1.xpose.msra.mxu0 0.0
    %71 = vmatprep.subr.mxu0 0.0
    %72 = vmatpush1.xpose.msra.mxu0 0.0
    %73 = vmatprep.subr.mxu0 0.0
    %74 = vmatpush1.xpose.msra.mxu0 0.0
    %75 = vmatprep.subr.mxu0 0.0
    %76 = vmatpush1.xpose.msra.mxu0 0.0
    %77 = vmatprep.subr.mxu0 0.0
    %78 = vmatpush1.xpose.msra.mxu0 0.0
    %79 = vmatprep.subr.mxu0 0.0
    %80 = vmatpush1.xpose.msra.mxu0 0.0
    %81 = vmatprep.subr.mxu0 %v36
    %82 = vmatpush1.xpose.msra.mxu0 %v35
    %83 = vmatprep.subr.mxu0 0.0
    %84 = vmatpush2.xpose.msra.mxu0 0.0
    %85 = vmatprep.subr.mxu0 0.0
    %86 = vmatpush2.xpose.msra.mxu0 0.0
    %87 = vmatprep.subr.mxu0 0.0
    %88 = vmatpush2.xpose.msra.mxu0 0.0
    %89 = vmatprep.subr.mxu0 0.0
    %90 = vmatpush2.xpose.msra.mxu0 0.0
    %91 = vmatprep.subr.mxu0 0.0
    %92 = vmatpush2.xpose.msra.mxu0 0.0
    %93 = vmatprep.subr.mxu0 0.0
    %94 = vmatpush2.xpose.msra.mxu0 0.0
    %95 = vmatprep.subr.mxu0 0.0
    %96 = vmatpush2.xpose.msra.mxu0 0.0
    %97 = vmatprep.subr.mxu0 0.0
    %98 = vmatpush2.xpose.msra.mxu0 0.0
    %99 = vmatprep.subr.mxu0 0.0
    %100 = vmatpush2.xpose.msra.mxu0 0.0
    %101 = vmatprep.subr.mxu0 0.0
    %102 = vmatpush2.xpose.msra.mxu0 0.0
    %103 = vmatprep.subr.mxu0 0.0
    %104 = vmatpush2.xpose.msra.mxu0 0.0
    %105 = vmatprep.subr.mxu0 0.0
    %106 = vmatpush2.xpose.msra.mxu0 0.0
    %107 = vmatprep.subr.mxu0 0.0
    %108 = vmatpush2.xpose.msra.mxu0 0.0
    %109 = vmatprep.subr.mxu0 0.0
    %110 = vmatpush2.xpose.msra.mxu0 0.0
    %111 = vmatprep.subr.mxu0 0.0
    %112 = vmatpush2.xpose.msra.mxu0 0.0
    %113 = vmatprep.subr.mxu0 0.0
    %114 = vmatpush2.xpose.msra.mxu0 0.0
    %115 = vmatprep.mubr.f32.mxu0 %v36
    %116 = vmatmul.mubr.f32.gmra.mxu0 %v35
    %v117 = vpop.f32.mrf.mxu0
    %v118 = vadd.f32 0.0, %v117
    %v119 = vpop.f32.mrf.mxu0
    %120 = vdwg.mxu0
    %121 = vmatprep.subr.mxu0 0.0
    %122 = vmatpush1.xpose.msra.mxu0 0.0
    %123 = vmatprep.subr.mxu0 0.0
    %124 = vmatpush1.xpose.msra.mxu0 0.0
    %125 = vmatprep.subr.mxu0 0.0
    %126 = vmatpush1.xpose.msra.mxu0 0.0
    %127 = vmatprep.subr.mxu0 0.0
    %128 = vmatpush1.xpose.msra.mxu0 0.0
    %129 = vmatprep.subr.mxu0 0.0
    %130 = vmatpush1.xpose.msra.mxu0 0.0
    %131 = vmatprep.subr.mxu0 0.0
    %132 = vmatpush1.xpose.msra.mxu0 0.0
    %133 = vmatprep.subr.mxu0 0.0
    %134 = vmatpush1.xpose.msra.mxu0 0.0
    %135 = vmatprep.subr.mxu0 0.0
    %136 = vmatpush1.xpose.msra.mxu0 0.0
    %137 = vmatprep.subr.mxu0 0.0
    %138 = vmatpush1.xpose.msra.mxu0 0.0
    %139 = vmatprep.subr.mxu0 0.0
    %140 = vmatpush1.xpose.msra.mxu0 0.0
    %141 = vmatprep.subr.mxu0 0.0
    %142 = vmatpush1.xpose.msra.mxu0 0.0
    %143 = vmatprep.subr.mxu0 0.0
    %144 = vmatpush1.xpose.msra.mxu0 0.0
    %145 = vmatprep.subr.mxu0 0.0
    %146 = vmatpush1.xpose.msra.mxu0 0.0
    %147 = vmatprep.subr.mxu0 0.0
    %148 = vmatpush1.xpose.msra.mxu0 0.0
    %149 = vmatprep.subr.mxu0 0.0
    %150 = vmatpush1.xpose.msra.mxu0 0.0
    %151 = vmatprep.subr.mxu0 %v38
    %152 = vmatpush1.xpose.msra.mxu0 %v37
    %153 = vmatprep.subr.mxu0 0.0
    %154 = vmatpush2.xpose.msra.mxu0 0.0
    %155 = vmatprep.subr.mxu0 0.0
    %156 = vmatpush2.xpose.msra.mxu0 0.0
    %157 = vmatprep.subr.mxu0 0.0
    %158 = vmatpush2.xpose.msra.mxu0 0.0
    %159 = vmatprep.subr.mxu0 0.0
    %160 = vmatpush2.xpose.msra.mxu0 0.0
    %161 = vmatprep.subr.mxu0 0.0
    %162 = vmatpush2.xpose.msra.mxu0 0.0
    %163 = vmatprep.subr.mxu0 0.0
    %164 = vmatpush2.xpose.msra.mxu0 0.0
    %165 = vmatprep.subr.mxu0 0.0
    %166 = vmatpush2.xpose.msra.mxu0 0.0
    %167 = vmatprep.subr.mxu0 0.0
    %168 = vmatpush2.xpose.msra.mxu0 0.0
    %169 = vmatprep.subr.mxu0 0.0
    %170 = vmatpush2.xpose.msra.mxu0 0.0
    %171 = vmatprep.subr.mxu0 0.0
    %172 = vmatpush2.xpose.msra.mxu0 0.0
    %173 = vmatprep.subr.mxu0 0.0
    %174 = vmatpush2.xpose.msra.mxu0 0.0
    %175 = vmatprep.subr.mxu0 0.0
    %176 = vmatpush2.xpose.msra.mxu0 0.0
    %177 = vmatprep.subr.mxu0 0.0
    %178 = vmatpush2.xpose.msra.mxu0 0.0
    %179 = vmatprep.subr.mxu0 0.0
    %180 = vmatpush2.xpose.msra.mxu0 0.0
    %181 = vmatprep.subr.mxu0 0.0
    %182 = vmatpush2.xpose.msra.mxu0 0.0
    %183 = vmatprep.subr.mxu0 0.0
    %184 = vmatpush2.xpose.msra.mxu0 0.0
    %185 = vmatprep.mubr.f32.mxu0 %v38
    %186 = vmatmul.mubr.f32.gmra.mxu0 %v37
    %v187 = vpop.f32.mrf.mxu0
    %v188 = vadd.f32 %v118, %v187
    %v189 = vpop.f32.mrf.mxu0
    %190 = vdwg.mxu0
    %191 = vmatprep.subr.mxu0 0.0
    %192 = vmatpush1.xpose.msra.mxu0 0.0
    %193 = vmatprep.subr.mxu0 0.0
    %194 = vmatpush1.xpose.msra.mxu0 0.0
    %195 = vmatprep.subr.mxu0 0.0
    %196 = vmatpush1.xpose.msra.mxu0 0.0
    %197 = vmatprep.subr.mxu0 0.0
    %198 = vmatpush1.xpose.msra.mxu0 0.0
    %199 = vmatprep.subr.mxu0 0.0
    %200 = vmatpush1.xpose.msra.mxu0 0.0
    %201 = vmatprep.subr.mxu0 0.0
    %202 = vmatpush1.xpose.msra.mxu0 0.0
    %203 = vmatprep.subr.mxu0 0.0
    %204 = vmatpush1.xpose.msra.mxu0 0.0
    %205 = vmatprep.subr.mxu0 0.0
    %206 = vmatpush1.xpose.msra.mxu0 0.0
    %207 = vmatprep.subr.mxu0 0.0
    %208 = vmatpush1.xpose.msra.mxu0 0.0
    %209 = vmatprep.subr.mxu0 0.0
    %210 = vmatpush1.xpose.msra.mxu0 0.0
    %211 = vmatprep.subr.mxu0 0.0
    %212 = vmatpush1.xpose.msra.mxu0 0.0
    %213 = vmatprep.subr.mxu0 0.0
    %214 = vmatpush1.xpose.msra.mxu0 0.0
    %215 = vmatprep.subr.mxu0 0.0
    %216 = vmatpush1.xpose.msra.mxu0 0.0
    %217 = vmatprep.subr.mxu0 0.0
    %218 = vmatpush1.xpose.msra.mxu0 0.0
    %219 = vmatprep.subr.mxu0 0.0
    %220 = vmatpush1.xpose.msra.mxu0 0.0
    %221 = vmatprep.subr.mxu0 %v40
    %222 = vmatpush1.xpose.msra.mxu0 %v39
    %223 = vmatprep.subr.mxu0 0.0
    %224 = vmatpush2.xpose.msra.mxu0 0.0
    %225 = vmatprep.subr.mxu0 0.0
    %226 = vmatpush2.xpose.msra.mxu0 0.0
    %227 = vmatprep.subr.mxu0 0.0
    %228 = vmatpush2.xpose.msra.mxu0 0.0
    %229 = vmatprep.subr.mxu0 0.0
    %230 = vmatpush2.xpose.msra.mxu0 0.0
    %231 = vmatprep.subr.mxu0 0.0
    %232 = vmatpush2.xpose.msra.mxu0 0.0
    %233 = vmatprep.subr.mxu0 0.0
    %234 = vmatpush2.xpose.msra.mxu0 0.0
    %235 = vmatprep.subr.mxu0 0.0
    %236 = vmatpush2.xpose.msra.mxu0 0.0
    %237 = vmatprep.subr.mxu0 0.0
    %238 = vmatpush2.xpose.msra.mxu0 0.0
    %239 = vmatprep.subr.mxu0 0.0
    %240 = vmatpush2.xpose.msra.mxu0 0.0
    %241 = vmatprep.subr.mxu0 0.0
    %242 = vmatpush2.xpose.msra.mxu0 0.0
    %243 = vmatprep.subr.mxu0 0.0
    %244 = vmatpush2.xpose.msra.mxu0 0.0
    %245 = vmatprep.subr.mxu0 0.0
    %246 = vmatpush2.xpose.msra.mxu0 0.0
    %247 = vmatprep.subr.mxu0 0.0
    %248 = vmatpush2.xpose.msra.mxu0 0.0
    %249 = vmatprep.subr.mxu0 0.0
    %250 = vmatpush2.xpose.msra.mxu0 0.0
    %251 = vmatprep.subr.mxu0 0.0
    %252 = vmatpush2.xpose.msra.mxu0 0.0
    %253 = vmatprep.subr.mxu0 0.0
    %254 = vmatpush2.xpose.msra.mxu0 0.0
    %255 = vmatprep.mubr.f32.mxu0 %v40
    %256 = vmatmul.mubr.f32.gmra.mxu0 %v39
    %v257 = vpop.f32.mrf.mxu0
    %v258 = vadd.f32 %v188, %v257
    %v259 = vpop.f32.mrf.mxu0
    %260 = vdwg.mxu0
    %261 = vmatprep.subr.mxu0 0.0
    %262 = vmatpush1.xpose.msra.mxu0 0.0
    %263 = vmatprep.subr.mxu0 0.0
    %264 = vmatpush1.xpose.msra.mxu0 0.0
    %265 = vmatprep.subr.mxu0 0.0
    %266 = vmatpush1.xpose.msra.mxu0 0.0
    %267 = vmatprep.subr.mxu0 0.0
    %268 = vmatpush1.xpose.msra.mxu0 0.0
    %269 = vmatprep.subr.mxu0 0.0
    %270 = vmatpush1.xpose.msra.mxu0 0.0
    %271 = vmatprep.subr.mxu0 0.0
    %272 = vmatpush1.xpose.msra.mxu0 0.0
    %273 = vmatprep.subr.mxu0 0.0
    %274 = vmatpush1.xpose.msra.mxu0 0.0
    %275 = vmatprep.subr.mxu0 0.0
    %276 = vmatpush1.xpose.msra.mxu0 0.0
    %277 = vmatprep.subr.mxu0 0.0
    %278 = vmatpush1.xpose.msra.mxu0 0.0
    %279 = vmatprep.subr.mxu0 0.0
    %280 = vmatpush1.xpose.msra.mxu0 0.0
    %281 = vmatprep.subr.mxu0 0.0
    %282 = vmatpush1.xpose.msra.mxu0 0.0
    %283 = vmatprep.subr.mxu0 0.0
    %284 = vmatpush1.xpose.msra.mxu0 0.0
    %285 = vmatprep.subr.mxu0 0.0
    %286 = vmatpush1.xpose.msra.mxu0 0.0
    %287 = vmatprep.subr.mxu0 0.0
    %288 = vmatpush1.xpose.msra.mxu0 0.0
    %289 = vmatprep.subr.mxu0 0.0
    %290 = vmatpush1.xpose.msra.mxu0 0.0
    %291 = vmatprep.subr.mxu0 %v42
    %292 = vmatpush1.xpose.msra.mxu0 %v41
    %293 = vmatprep.subr.mxu0 0.0
    %294 = vmatpush2.xpose.msra.mxu0 0.0
    %295 = vmatprep.subr.mxu0 0.0
    %296 = vmatpush2.xpose.msra.mxu0 0.0
    %297 = vmatprep.subr.mxu0 0.0
    %298 = vmatpush2.xpose.msra.mxu0 0.0
    %299 = vmatprep.subr.mxu0 0.0
    %300 = vmatpush2.xpose.msra.mxu0 0.0
    %301 = vmatprep.subr.mxu0 0.0
    %302 = vmatpush2.xpose.msra.mxu0 0.0
    %303 = vmatprep.subr.mxu0 0.0
    %304 = vmatpush2.xpose.msra.mxu0 0.0
    %305 = vmatprep.subr.mxu0 0.0
    %306 = vmatpush2.xpose.msra.mxu0 0.0
    %307 = vmatprep.subr.mxu0 0.0
    %308 = vmatpush2.xpose.msra.mxu0 0.0
    %309 = vmatprep.subr.mxu0 0.0
    %310 = vmatpush2.xpose.msra.mxu0 0.0
    %311 = vmatprep.subr.mxu0 0.0
    %312 = vmatpush2.xpose.msra.mxu0 0.0
    %313 = vmatprep.subr.mxu0 0.0
    %314 = vmatpush2.xpose.msra.mxu0 0.0
    %315 = vmatprep.subr.mxu0 0.0
    %316 = vmatpush2.xpose.msra.mxu0 0.0
    %317 = vmatprep.subr.mxu0 0.0
    %318 = vmatpush2.xpose.msra.mxu0 0.0
    %319 = vmatprep.subr.mxu0 0.0
    %320 = vmatpush2.xpose.msra.mxu0 0.0
    %321 = vmatprep.subr.mxu0 0.0
    %322 = vmatpush2.xpose.msra.mxu0 0.0
    %323 = vmatprep.subr.mxu0 0.0
    %324 = vmatpush2.xpose.msra.mxu0 0.0
    %325 = vmatprep.mubr.f32.mxu0 %v42
    %326 = vmatmul.mubr.f32.gmra.mxu0 %v41
    %v327 = vpop.f32.mrf.mxu0
    %v328 = vadd.f32 %v258, %v327
    %v329 = vpop.f32.mrf.mxu0
    %330 = vdwg.mxu0
    %331 = vmatprep.subr.mxu0 0.0
    %332 = vmatpush1.xpose.msra.mxu0 0.0
    %333 = vmatprep.subr.mxu0 0.0
    %334 = vmatpush1.xpose.msra.mxu0 0.0
    %335 = vmatprep.subr.mxu0 0.0
    %336 = vmatpush1.xpose.msra.mxu0 0.0
    %337 = vmatprep.subr.mxu0 0.0
    %338 = vmatpush1.xpose.msra.mxu0 0.0
    %339 = vmatprep.subr.mxu0 0.0
    %340 = vmatpush1.xpose.msra.mxu0 0.0
    %341 = vmatprep.subr.mxu0 0.0
    %342 = vmatpush1.xpose.msra.mxu0 0.0
    %343 = vmatprep.subr.mxu0 0.0
    %344 = vmatpush1.xpose.msra.mxu0 0.0
    %345 = vmatprep.subr.mxu0 0.0
    %346 = vmatpush1.xpose.msra.mxu0 0.0
    %347 = vmatprep.subr.mxu0 0.0
    %348 = vmatpush1.xpose.msra.mxu0 0.0
    %349 = vmatprep.subr.mxu0 0.0
    %350 = vmatpush1.xpose.msra.mxu0 0.0
    %351 = vmatprep.subr.mxu0 0.0
    %352 = vmatpush1.xpose.msra.mxu0 0.0
    %353 = vmatprep.subr.mxu0 0.0
    %354 = vmatpush1.xpose.msra.mxu0 0.0
    %355 = vmatprep.subr.mxu0 0.0
    %356 = vmatpush1.xpose.msra.mxu0 0.0
    %357 = vmatprep.subr.mxu0 0.0
    %358 = vmatpush1.xpose.msra.mxu0 0.0
    %359 = vmatprep.subr.mxu0 0.0
    %360 = vmatpush1.xpose.msra.mxu0 0.0
    %361 = vmatprep.subr.mxu0 %v44
    %362 = vmatpush1.xpose.msra.mxu0 %v43
    %363 = vmatprep.subr.mxu0 0.0
    %364 = vmatpush2.xpose.msra.mxu0 0.0
    %365 = vmatprep.subr.mxu0 0.0
    %366 = vmatpush2.xpose.msra.mxu0 0.0
    %367 = vmatprep.subr.mxu0 0.0
    %368 = vmatpush2.xpose.msra.mxu0 0.0
    %369 = vmatprep.subr.mxu0 0.0
    %370 = vmatpush2.xpose.msra.mxu0 0.0
    %371 = vmatprep.subr.mxu0 0.0
    %372 = vmatpush2.xpose.msra.mxu0 0.0
    %373 = vmatprep.subr.mxu0 0.0
    %374 = vmatpush2.xpose.msra.mxu0 0.0
    %375 = vmatprep.subr.mxu0 0.0
    %376 = vmatpush2.xpose.msra.mxu0 0.0
    %377 = vmatprep.subr.mxu0 0.0
    %378 = vmatpush2.xpose.msra.mxu0 0.0
    %379 = vmatprep.subr.mxu0 0.0
    %380 = vmatpush2.xpose.msra.mxu0 0.0
    %381 = vmatprep.subr.mxu0 0.0
    %382 = vmatpush2.xpose.msra.mxu0 0.0
    %383 = vmatprep.subr.mxu0 0.0
    %384 = vmatpush2.xpose.msra.mxu0 0.0
    %385 = vmatprep.subr.mxu0 0.0
    %386 = vmatpush2.xpose.msra.mxu0 0.0
    %387 = vmatprep.subr.mxu0 0.0
    %388 = vmatpush2.xpose.msra.mxu0 0.0
    %389 = vmatprep.subr.mxu0 0.0
    %390 = vmatpush2.xpose.msra.mxu0 0.0
    %391 = vmatprep.subr.mxu0 0.0
    %392 = vmatpush2.xpose.msra.mxu0 0.0
    %393 = vmatprep.subr.mxu0 0.0
    %394 = vmatpush2.xpose.msra.mxu0 0.0
    %395 = vmatprep.mubr.f32.mxu0 %v44
    %396 = vmatmul.mubr.f32.gmra.mxu0 %v43
    %v397 = vpop.f32.mrf.mxu0
    %v398 = vadd.f32 0.0, %v397
    %v399 = vpop.f32.mrf.mxu0
    %400 = vdwg.mxu0
    %401 = vmatprep.subr.mxu0 0.0
    %402 = vmatpush1.xpose.msra.mxu0 0.0
    %403 = vmatprep.subr.mxu0 0.0
    %404 = vmatpush1.xpose.msra.mxu0 0.0
    %405 = vmatprep.subr.mxu0 0.0
    %406 = vmatpush1.xpose.msra.mxu0 0.0
    %407 = vmatprep.subr.mxu0 0.0
    %408 = vmatpush1.xpose.msra.mxu0 0.0
    %409 = vmatprep.subr.mxu0 0.0
    %410 = vmatpush1.xpose.msra.mxu0 0.0
    %411 = vmatprep.subr.mxu0 0.0
    %412 = vmatpush1.xpose.msra.mxu0 0.0
    %413 = vmatprep.subr.mxu0 0.0
    %414 = vmatpush1.xpose.msra.mxu0 0.0
    %415 = vmatprep.subr.mxu0 0.0
    %416 = vmatpush1.xpose.msra.mxu0 0.0
    %417 = vmatprep.subr.mxu0 0.0
    %418 = vmatpush1.xpose.msra.mxu0 0.0
    %419 = vmatprep.subr.mxu0 0.0
    %420 = vmatpush1.xpose.msra.mxu0 0.0
    %421 = vmatprep.subr.mxu0 0.0
    %422 = vmatpush1.xpose.msra.mxu0 0.0
    %423 = vmatprep.subr.mxu0 0.0
    %424 = vmatpush1.xpose.msra.mxu0 0.0
    %425 = vmatprep.subr.mxu0 0.0
    %426 = vmatpush1.xpose.msra.mxu0 0.0
    %427 = vmatprep.subr.mxu0 0.0
    %428 = vmatpush1.xpose.msra.mxu0 0.0
    %429 = vmatprep.subr.mxu0 0.0
    %430 = vmatpush1.xpose.msra.mxu0 0.0
    %431 = vmatprep.subr.mxu0 %v46
    %432 = vmatpush1.xpose.msra.mxu0 %v45
    %433 = vmatprep.subr.mxu0 0.0
    %434 = vmatpush2.xpose.msra.mxu0 0.0
    %435 = vmatprep.subr.mxu0 0.0
    %436 = vmatpush2.xpose.msra.mxu0 0.0
    %437 = vmatprep.subr.mxu0 0.0
    %438 = vmatpush2.xpose.msra.mxu0 0.0
    %439 = vmatprep.subr.mxu0 0.0
    %440 = vmatpush2.xpose.msra.mxu0 0.0
    %441 = vmatprep.subr.mxu0 0.0
    %442 = vmatpush2.xpose.msra.mxu0 0.0
    %443 = vmatprep.subr.mxu0 0.0
    %444 = vmatpush2.xpose.msra.mxu0 0.0
    %445 = vmatprep.subr.mxu0 0.0
    %446 = vmatpush2.xpose.msra.mxu0 0.0
    %447 = vmatprep.subr.mxu0 0.0
    %448 = vmatpush2.xpose.msra.mxu0 0.0
    %449 = vmatprep.subr.mxu0 0.0
    %450 = vmatpush2.xpose.msra.mxu0 0.0
    %451 = vmatprep.subr.mxu0 0.0
    %452 = vmatpush2.xpose.msra.mxu0 0.0
    %453 = vmatprep.subr.mxu0 0.0
    %454 = vmatpush2.xpose.msra.mxu0 0.0
    %455 = vmatprep.subr.mxu0 0.0
    %456 = vmatpush2.xpose.msra.mxu0 0.0
    %457 = vmatprep.subr.mxu0 0.0
    %458 = vmatpush2.xpose.msra.mxu0 0.0
    %459 = vmatprep.subr.mxu0 0.0
    %460 = vmatpush2.xpose.msra.mxu0 0.0
    %461 = vmatprep.subr.mxu0 0.0
    %462 = vmatpush2.xpose.msra.mxu0 0.0
    %463 = vmatprep.subr.mxu0 0.0
    %464 = vmatpush2.xpose.msra.mxu0 0.0
    %465 = vmatprep.mubr.f32.mxu0 %v46
    %466 = vmatmul.mubr.f32.gmra.mxu0 %v45
    %v467 = vpop.f32.mrf.mxu0
    %v468 = vadd.f32 %v398, %v467
    %v469 = vpop.f32.mrf.mxu0
    %470 = vdwg.mxu0
    %471 = vmatprep.subr.mxu0 0.0
    %472 = vmatpush1.xpose.msra.mxu0 0.0
    %473 = vmatprep.subr.mxu0 0.0
    %474 = vmatpush1.xpose.msra.mxu0 0.0
    %475 = vmatprep.subr.mxu0 0.0
    %476 = vmatpush1.xpose.msra.mxu0 0.0
    %477 = vmatprep.subr.mxu0 0.0
    %478 = vmatpush1.xpose.msra.mxu0 0.0
    %479 = vmatprep.subr.mxu0 0.0
    %480 = vmatpush1.xpose.msra.mxu0 0.0
    %481 = vmatprep.subr.mxu0 0.0
    %482 = vmatpush1.xpose.msra.mxu0 0.0
    %483 = vmatprep.subr.mxu0 0.0
    %484 = vmatpush1.xpose.msra.mxu0 0.0
    %485 = vmatprep.subr.mxu0 0.0
    %486 = vmatpush1.xpose.msra.mxu0 0.0
    %487 = vmatprep.subr.mxu0 0.0
    %488 = vmatpush1.xpose.msra.mxu0 0.0
    %489 = vmatprep.subr.mxu0 0.0
    %490 = vmatpush1.xpose.msra.mxu0 0.0
    %491 = vmatprep.subr.mxu0 0.0
    %492 = vmatpush1.xpose.msra.mxu0 0.0
    %493 = vmatprep.subr.mxu0 0.0
    %494 = vmatpush1.xpose.msra.mxu0 0.0
    %495 = vmatprep.subr.mxu0 0.0
    %496 = vmatpush1.xpose.msra.mxu0 0.0
    %497 = vmatprep.subr.mxu0 0.0
    %498 = vmatpush1.xpose.msra.mxu0 0.0
    %499 = vmatprep.subr.mxu0 0.0
    %500 = vmatpush1.xpose.msra.mxu0 0.0
    %501 = vmatprep.subr.mxu0 %v48
    %502 = vmatpush1.xpose.msra.mxu0 %v47
    %503 = vmatprep.subr.mxu0 0.0
    %504 = vmatpush2.xpose.msra.mxu0 0.0
    %505 = vmatprep.subr.mxu0 0.0
    %506 = vmatpush2.xpose.msra.mxu0 0.0
    %507 = vmatprep.subr.mxu0 0.0
    %508 = vmatpush2.xpose.msra.mxu0 0.0
    %509 = vmatprep.subr.mxu0 0.0
    %510 = vmatpush2.xpose.msra.mxu0 0.0
    %511 = vmatprep.subr.mxu0 0.0
    %512 = vmatpush2.xpose.msra.mxu0 0.0
    %513 = vmatprep.subr.mxu0 0.0
    %514 = vmatpush2.xpose.msra.mxu0 0.0
    %515 = vmatprep.subr.mxu0 0.0
    %516 = vmatpush2.xpose.msra.mxu0 0.0
    %517 = vmatprep.subr.mxu0 0.0
    %518 = vmatpush2.xpose.msra.mxu0 0.0
    %519 = vmatprep.subr.mxu0 0.0
    %520 = vmatpush2.xpose.msra.mxu0 0.0
    %521 = vmatprep.subr.mxu0 0.0
    %522 = vmatpush2.xpose.msra.mxu0 0.0
    %523 = vmatprep.subr.mxu0 0.0
    %524 = vmatpush2.xpose.msra.mxu0 0.0
    %525 = vmatprep.subr.mxu0 0.0
    %526 = vmatpush2.xpose.msra.mxu0 0.0
    %527 = vmatprep.subr.mxu0 0.0
    %528 = vmatpush2.xpose.msra.mxu0 0.0
    %529 = vmatprep.subr.mxu0 0.0
    %530 = vmatpush2.xpose.msra.mxu0 0.0
    %531 = vmatprep.subr.mxu0 0.0
    %532 = vmatpush2.xpose.msra.mxu0 0.0
    %533 = vmatprep.subr.mxu0 0.0
    %534 = vmatpush2.xpose.msra.mxu0 0.0
    %535 = vmatprep.mubr.f32.mxu0 %v48
    %536 = vmatmul.mubr.f32.gmra.mxu0 %v47
    %v537 = vpop.f32.mrf.mxu0
    %v538 = vadd.f32 %v468, %v537
    %v539 = vpop.f32.mrf.mxu0
    %540 = vdwg.mxu0
    %541 = vmatprep.subr.mxu0 0.0
    %542 = vmatpush1.xpose.msra.mxu0 0.0
    %543 = vmatprep.subr.mxu0 0.0
    %544 = vmatpush1.xpose.msra.mxu0 0.0
    %545 = vmatprep.subr.mxu0 0.0
    %546 = vmatpush1.xpose.msra.mxu0 0.0
    %547 = vmatprep.subr.mxu0 0.0
    %548 = vmatpush1.xpose.msra.mxu0 0.0
    %549 = vmatprep.subr.mxu0 0.0
    %550 = vmatpush1.xpose.msra.mxu0 0.0
    %551 = vmatprep.subr.mxu0 0.0
    %552 = vmatpush1.xpose.msra.mxu0 0.0
    %553 = vmatprep.subr.mxu0 0.0
    %554 = vmatpush1.xpose.msra.mxu0 0.0
    %555 = vmatprep.subr.mxu0 0.0
    %556 = vmatpush1.xpose.msra.mxu0 0.0
    %557 = vmatprep.subr.mxu0 0.0
    %558 = vmatpush1.xpose.msra.mxu0 0.0
    %559 = vmatprep.subr.mxu0 0.0
    %560 = vmatpush1.xpose.msra.mxu0 0.0
    %561 = vmatprep.subr.mxu0 0.0
    %562 = vmatpush1.xpose.msra.mxu0 0.0
    %563 = vmatprep.subr.mxu0 0.0
    %564 = vmatpush1.xpose.msra.mxu0 0.0
    %565 = vmatprep.subr.mxu0 0.0
    %566 = vmatpush1.xpose.msra.mxu0 0.0
    %567 = vmatprep.subr.mxu0 0.0
    %568 = vmatpush1.xpose.msra.mxu0 0.0
    %569 = vmatprep.subr.mxu0 0.0
    %570 = vmatpush1.xpose.msra.mxu0 0.0
    %571 = vmatprep.subr.mxu0 %v50
    %572 = vmatpush1.xpose.msra.mxu0 %v49
    %573 = vmatprep.subr.mxu0 0.0
    %574 = vmatpush2.xpose.msra.mxu0 0.0
    %575 = vmatprep.subr.mxu0 0.0
    %576 = vmatpush2.xpose.msra.mxu0 0.0
    %577 = vmatprep.subr.mxu0 0.0
    %578 = vmatpush2.xpose.msra.mxu0 0.0
    %579 = vmatprep.subr.mxu0 0.0
    %580 = vmatpush2.xpose.msra.mxu0 0.0
    %581 = vmatprep.subr.mxu0 0.0
    %582 = vmatpush2.xpose.msra.mxu0 0.0
    %583 = vmatprep.subr.mxu0 0.0
    %584 = vmatpush2.xpose.msra.mxu0 0.0
    %585 = vmatprep.subr.mxu0 0.0
    %586 = vmatpush2.xpose.msra.mxu0 0.0
    %587 = vmatprep.subr.mxu0 0.0
    %588 = vmatpush2.xpose.msra.mxu0 0.0
    %589 = vmatprep.subr.mxu0 0.0
    %590 = vmatpush2.xpose.msra.mxu0 0.0
    %591 = vmatprep.subr.mxu0 0.0
    %592 = vmatpush2.xpose.msra.mxu0 0.0
    %593 = vmatprep.subr.mxu0 0.0
    %594 = vmatpush2.xpose.msra.mxu0 0.0
    %595 = vmatprep.subr.mxu0 0.0
    %596 = vmatpush2.xpose.msra.mxu0 0.0
    %597 = vmatprep.subr.mxu0 0.0
    %598 = vmatpush2.xpose.msra.mxu0 0.0
    %599 = vmatprep.subr.mxu0 0.0
    %600 = vmatpush2.xpose.msra.mxu0 0.0
    %601 = vmatprep.subr.mxu0 0.0
    %602 = vmatpush2.xpose.msra.mxu0 0.0
    %603 = vmatprep.subr.mxu0 0.0
    %604 = vmatpush2.xpose.msra.mxu0 0.0
    %605 = vmatprep.mubr.f32.mxu0 %v50
    %606 = vmatmul.mubr.f32.gmra.mxu0 %v49
    %v607 = vpop.f32.mrf.mxu0
    %v608 = vadd.f32 %v538, %v607
    %v609 = vpop.f32.mrf.mxu0
    %610 = vdwg.mxu0
    %v611 = vmul.f32 %v328, 0.03125
    %v612 = vmul.f32 %v608, 0.03125
    %vm613 = vcmask 64512
    %v614 = vsel %vm613, %v611, -inf
    %615 = vmax.xlane.f32.xlu0 %v614
    %v616 = vpop.xlane.xlu0 %615
    %v617 = vsel %vm613, %v612, -inf
    %618 = vmax.xlane.f32.xlu0 %v617
    %v619 = vpop.xlane.xlu0 %618
    %v620 = vsub.f32 %v611, %v616
    %v621 = vsub.f32 %v612, %v619
    %v622 = vmul.f32 %v620, 1.442695
    %v623 = vpow.pop %v622
    %v624 = vmul.f32 %v621, 1.442695
    %v625 = vpow.pop %v624
    %v626 = vsel %vm613, %v623, 0.0
    %627 = vadd.xlane.f32.xlu0 %v626
    %v628 = vpop.xlane.xlu0 %627
    %v629 = vsel %vm613, %v625, 0.0
    %630 = vadd.xlane.f32.xlu0 %v629
    %v631 = vpop.xlane.xlu0 %630
    %v632 = vrcp.pop %v628
    %v633 = vrcp.pop %v631
    %v634 = vmul.f32 %v623, %v632
    %v635 = vmul.f32 %v625, %v633
    %v636 = vld [vmem:[#allocation2] sm:$0xff]
    %v637 = vld [vmem:[#allocation2 + $0x8] sm:$0xff]
    %v638 = vld [vmem:[#allocation2 + $0x10] sm:$0xff]
    %v639 = vld [vmem:[#allocation2 + $0x18] sm:$0xff]
    %v640 = vld [vmem:[#allocation2 + $0x20] sm:$0xff]
    %v641 = vld [vmem:[#allocation2 + $0x28] sm:$0xff]
    %v642 = vld [vmem:[#allocation2 + $0x30] sm:$0xff]
    %v643 = vld [vmem:[#allocation2 + $0x38] sm:$0xff]
    %v644 = vld [vmem:[#allocation2 + $0x40] sm:$0xff]
    %v645 = vld [vmem:[#allocation2 + $0x48] sm:$0xff]
    %v646 = vld [vmem:[#allocation2 + $0x50] sm:$0xff]
    %v647 = vld [vmem:[#allocation2 + $0x58] sm:$0xff]
    %v648 = vld [vmem:[#allocation2 + $0x60] sm:$0xff]
    %v649 = vld [vmem:[#allocation2 + $0x68] sm:$0xff]
    %v650 = vld [vmem:[#allocation2 + $0x70] sm:$0xff]
    %v651 = vld [vmem:[#allocation2 + $0x78] sm:$0xff]
    %v652 = vld [vmem:[#allocation2 + $0x80] sm:$0xff]
    %v653 = vld [vmem:[#allocation2 + $0x88] sm:$0xff]
    %v654 = vld [vmem:[#allocation2 + $0x90] sm:$0xff]
    %v655 = vld [vmem:[#allocation2 + $0x98] sm:$0xff]
    %v656 = vld [vmem:[#allocation2 + $0xa0] sm:$0xff]
    %v657 = vld [vmem:[#allocation2 + $0xa8] sm:$0xff]
    %v658 = vld [vmem:[#allocation2 + $0xb0] sm:$0xff]
    %v659 = vld [vmem:[#allocation2 + $0xb8] sm:$0xff]
    %v660 = vld [vmem:[#allocation2 + $0xc0] sm:$0xff]
    %v661 = vld [vmem:[#allocation2 + $0xc8] sm:$0xff]
    %v662 = vld [vmem:[#allocation2 + $0xd0] sm:$0xff]
    %v663 = vld [vmem:[#allocation2 + $0xd8] sm:$0xff]
    %v664 = vld [vmem:[#allocation2 + $0xe0] sm:$0xff]
    %v665 = vld [vmem:[#allocation2 + $0xe8] sm:$0xff]
    %v666 = vld [vmem:[#allocation2 + $0xf0] sm:$0xff]
    %v667 = vld [vmem:[#allocation2 + $0xf8] sm:$0xff]
    %v668 = vld [vmem:[#allocation2 + $0x100] sm:$0xff]
    %v669 = vld [vmem:[#allocation2 + $0x108] sm:$0xff]
    %v670 = vld [vmem:[#allocation2 + $0x110] sm:$0xff]
    %v671 = vld [vmem:[#allocation2 + $0x118] sm:$0xff]
    %v672 = vld [vmem:[#allocation2 + $0x120] sm:$0xff]
    %v673 = vld [vmem:[#allocation2 + $0x128] sm:$0xff]
    %v674 = vld [vmem:[#allocation2 + $0x130] sm:$0xff]
    %v675 = vld [vmem:[#allocation2 + $0x138] sm:$0xff]
    %v676 = vld [vmem:[#allocation2 + $0x140] sm:$0xff]
    %v677 = vld [vmem:[#allocation2 + $0x148] sm:$0xff]
    %v678 = vld [vmem:[#allocation2 + $0x150] sm:$0xff]
    %v679 = vld [vmem:[#allocation2 + $0x158] sm:$0xff]
    %v680 = vld [vmem:[#allocation2 + $0x160] sm:$0xff]
    %v681 = vld [vmem:[#allocation2 + $0x168] sm:$0xff]
    %v682 = vld [vmem:[#allocation2 + $0x170] sm:$0xff]
    %v683 = vld [vmem:[#allocation2 + $0x178] sm:$0xff]
    %v684 = vld [vmem:[#allocation2 + $0x180] sm:$0xff]
    %v685 = vld [vmem:[#allocation2 + $0x188] sm:$0xff]
    %v686 = vld [vmem:[#allocation2 + $0x190] sm:$0xff]
    %v687 = vld [vmem:[#allocation2 + $0x198] sm:$0xff]
    %v688 = vld [vmem:[#allocation2 + $0x1a0] sm:$0xff]
    %v689 = vld [vmem:[#allocation2 + $0x1a8] sm:$0xff]
    %v690 = vld [vmem:[#allocation2 + $0x1b0] sm:$0xff]
    %v691 = vld [vmem:[#allocation2 + $0x1b8] sm:$0xff]
    %v692 = vld [vmem:[#allocation2 + $0x1c0] sm:$0xff]
    %v693 = vld [vmem:[#allocation2 + $0x1c8] sm:$0xff]
    %v694 = vld [vmem:[#allocation2 + $0x1d0] sm:$0xff]
    %v695 = vld [vmem:[#allocation2 + $0x1d8] sm:$0xff]
    %v696 = vld [vmem:[#allocation2 + $0x1e0] sm:$0xff]
    %v697 = vld [vmem:[#allocation2 + $0x1e8] sm:$0xff]
    %v698 = vld [vmem:[#allocation2 + $0x1f0] sm:$0xff]
    %v699 = vld [vmem:[#allocation2 + $0x1f8] sm:$0xff]
    %v700 = vld [vmem:[#allocation2 + $0x200] sm:$0xff]
    %v701 = vld [vmem:[#allocation2 + $0x208] sm:$0xff]
    %v702 = vld [vmem:[#allocation2 + $0x210] sm:$0xff]
    %v703 = vld [vmem:[#allocation2 + $0x218] sm:$0xff]
    %v704 = vld [vmem:[#allocation2 + $0x220] sm:$0xff]
    %v705 = vld [vmem:[#allocation2 + $0x228] sm:$0xff]
    %v706 = vld [vmem:[#allocation2 + $0x230] sm:$0xff]
    %v707 = vld [vmem:[#allocation2 + $0x238] sm:$0xff]
    %v708 = vld [vmem:[#allocation2 + $0x240] sm:$0xff]
    %v709 = vld [vmem:[#allocation2 + $0x248] sm:$0xff]
    %v710 = vld [vmem:[#allocation2 + $0x250] sm:$0xff]
    %v711 = vld [vmem:[#allocation2 + $0x258] sm:$0xff]
    %v712 = vld [vmem:[#allocation2 + $0x260] sm:$0xff]
    %v713 = vld [vmem:[#allocation2 + $0x268] sm:$0xff]
    %v714 = vld [vmem:[#allocation2 + $0x270] sm:$0xff]
    %v715 = vld [vmem:[#allocation2 + $0x278] sm:$0xff]
    %v716 = vld [vmem:[#allocation2 + $0x280] sm:$0xff]
    %v717 = vld [vmem:[#allocation2 + $0x288] sm:$0xff]
    %v718 = vld [vmem:[#allocation2 + $0x290] sm:$0xff]
    %v719 = vld [vmem:[#allocation2 + $0x298] sm:$0xff]
    %v720 = vld [vmem:[#allocation2 + $0x2a0] sm:$0xff]
    %v721 = vld [vmem:[#allocation2 + $0x2a8] sm:$0xff]
    %v722 = vld [vmem:[#allocation2 + $0x2b0] sm:$0xff]
    %v723 = vld [vmem:[#allocation2 + $0x2b8] sm:$0xff]
    %v724 = vld [vmem:[#allocation2 + $0x2c0] sm:$0xff]
    %v725 = vld [vmem:[#allocation2 + $0x2c8] sm:$0xff]
    %v726 = vld [vmem:[#allocation2 + $0x2d0] sm:$0xff]
    %v727 = vld [vmem:[#allocation2 + $0x2d8] sm:$0xff]
    %v728 = vld [vmem:[#allocation2 + $0x2e0] sm:$0xff]
    %v729 = vld [vmem:[#allocation2 + $0x2e8] sm:$0xff]
    %v730 = vld [vmem:[#allocation2 + $0x2f0] sm:$0xff]
    %v731 = vld [vmem:[#allocation2 + $0x2f8] sm:$0xff]
    %v732 = vld [vmem:[#allocation2 + $0x300] sm:$0xff]
    %v733 = vld [vmem:[#allocation2 + $0x308] sm:$0xff]
    %v734 = vld [vmem:[#allocation2 + $0x310] sm:$0xff]
    %v735 = vld [vmem:[#allocation2 + $0x318] sm:$0xff]
    %v736 = vld [vmem:[#allocation2 + $0x320] sm:$0xff]
    %v737 = vld [vmem:[#allocation2 + $0x328] sm:$0xff]
    %v738 = vld [vmem:[#allocation2 + $0x330] sm:$0xff]
    %v739 = vld [vmem:[#allocation2 + $0x338] sm:$0xff]
    %v740 = vld [vmem:[#allocation2 + $0x340] sm:$0xff]
    %v741 = vld [vmem:[#allocation2 + $0x348] sm:$0xff]
    %v742 = vld [vmem:[#allocation2 + $0x350] sm:$0xff]
    %v743 = vld [vmem:[#allocation2 + $0x358] sm:$0xff]
    %v744 = vld [vmem:[#allocation2 + $0x360] sm:$0xff]
    %v745 = vld [vmem:[#allocation2 + $0x368] sm:$0xff]
    %v746 = vld [vmem:[#allocation2 + $0x370] sm:$0xff]
    %v747 = vld [vmem:[#allocation2 + $0x378] sm:$0xff]
    %v748 = vld [vmem:[#allocation2 + $0x380] sm:$0xff]
    %v749 = vld [vmem:[#allocation2 + $0x388] sm:$0xff]
    %v750 = vld [vmem:[#allocation2 + $0x390] sm:$0xff]
    %v751 = vld [vmem:[#allocation2 + $0x398] sm:$0xff]
    %v752 = vld [vmem:[#allocation2 + $0x3a0] sm:$0xff]
    %v753 = vld [vmem:[#allocation2 + $0x3a8] sm:$0xff]
    %v754 = vld [vmem:[#allocation2 + $0x3b0] sm:$0xff]
    %v755 = vld [vmem:[#allocation2 + $0x3b8] sm:$0xff]
    %v756 = vld [vmem:[#allocation2 + $0x3c0] sm:$0xff]
    %v757 = vld [vmem:[#allocation2 + $0x3c8] sm:$0xff]
    %v758 = vld [vmem:[#allocation2 + $0x3d0] sm:$0xff]
    %v759 = vld [vmem:[#allocation2 + $0x3d8] sm:$0xff]
    %v760 = vld [vmem:[#allocation2 + $0x3e0] sm:$0xff]
    %v761 = vld [vmem:[#allocation2 + $0x3e8] sm:$0xff]
    %v762 = vld [vmem:[#allocation2 + $0x3f0] sm:$0xff]
    %v763 = vld [vmem:[#allocation2 + $0x3f8] sm:$0xff]
    %v764 = vld [vmem:[#allocation2 + $0x400] sm:$0xff]
    %v765 = vld [vmem:[#allocation2 + $0x408] sm:$0xff]
    %v766 = vld [vmem:[#allocation2 + $0x410] sm:$0xff]
    %v767 = vld [vmem:[#allocation2 + $0x418] sm:$0xff]
    %v768 = vld [vmem:[#allocation2 + $0x420] sm:$0xff]
    %v769 = vld [vmem:[#allocation2 + $0x428] sm:$0xff]
    %v770 = vld [vmem:[#allocation2 + $0x430] sm:$0xff]
    %v771 = vld [vmem:[#allocation2 + $0x438] sm:$0xff]
    %v772 = vld [vmem:[#allocation2 + $0x440] sm:$0xff]
    %v773 = vld [vmem:[#allocation2 + $0x448] sm:$0xff]
    %v774 = vld [vmem:[#allocation2 + $0x450] sm:$0xff]
    %v775 = vld [vmem:[#allocation2 + $0x458] sm:$0xff]
    %v776 = vld [vmem:[#allocation2 + $0x460] sm:$0xff]
    %v777 = vld [vmem:[#allocation2 + $0x468] sm:$0xff]
    %v778 = vld [vmem:[#allocation2 + $0x470] sm:$0xff]
    %v779 = vld [vmem:[#allocation2 + $0x478] sm:$0xff]
    %v780 = vld [vmem:[#allocation2 + $0x480] sm:$0xff]
    %v781 = vld [vmem:[#allocation2 + $0x488] sm:$0xff]
    %v782 = vld [vmem:[#allocation2 + $0x490] sm:$0xff]
    %v783 = vld [vmem:[#allocation2 + $0x498] sm:$0xff]
    %v784 = vld [vmem:[#allocation2 + $0x4a0] sm:$0xff]
    %v785 = vld [vmem:[#allocation2 + $0x4a8] sm:$0xff]
    %v786 = vld [vmem:[#allocation2 + $0x4b0] sm:$0xff]
    %v787 = vld [vmem:[#allocation2 + $0x4b8] sm:$0xff]
    %v788 = vld [vmem:[#allocation2 + $0x4c0] sm:$0xff]
    %v789 = vld [vmem:[#allocation2 + $0x4c8] sm:$0xff]
    %v790 = vld [vmem:[#allocation2 + $0x4d0] sm:$0xff]
    %v791 = vld [vmem:[#allocation2 + $0x4d8] sm:$0xff]
    %v792 = vld [vmem:[#allocation2 + $0x4e0] sm:$0xff]
    %v793 = vld [vmem:[#allocation2 + $0x4e8] sm:$0xff]
    %v794 = vld [vmem:[#allocation2 + $0x4f0] sm:$0xff]
    %v795 = vld [vmem:[#allocation2 + $0x4f8] sm:$0xff]
    %v796 = vld [vmem:[#allocation2 + $0x500] sm:$0xff]
    %v797 = vld [vmem:[#allocation2 + $0x508] sm:$0xff]
    %v798 = vld [vmem:[#allocation2 + $0x510] sm:$0xff]
    %v799 = vld [vmem:[#allocation2 + $0x518] sm:$0xff]
    %v800 = vld [vmem:[#allocation2 + $0x520] sm:$0xff]
    %v801 = vld [vmem:[#allocation2 + $0x528] sm:$0xff]
    %v802 = vld [vmem:[#allocation2 + $0x530] sm:$0xff]
    %v803 = vld [vmem:[#allocation2 + $0x538] sm:$0xff]
    %v804 = vld [vmem:[#allocation2 + $0x540] sm:$0xff]
    %v805 = vld [vmem:[#allocation2 + $0x548] sm:$0xff]
    %v806 = vld [vmem:[#allocation2 + $0x550] sm:$0xff]
    %v807 = vld [vmem:[#allocation2 + $0x558] sm:$0xff]
    %v808 = vld [vmem:[#allocation2 + $0x560] sm:$0xff]
    %v809 = vld [vmem:[#allocation2 + $0x568] sm:$0xff]
    %v810 = vld [vmem:[#allocation2 + $0x570] sm:$0xff]
    %v811 = vld [vmem:[#allocation2 + $0x578] sm:$0xff]
    %v812 = vld [vmem:[#allocation2 + $0x580] sm:$0xff]
    %v813 = vld [vmem:[#allocation2 + $0x588] sm:$0xff]
    %v814 = vld [vmem:[#allocation2 + $0x590] sm:$0xff]
    %v815 = vld [vmem:[#allocation2 + $0x598] sm:$0xff]
    %v816 = vld [vmem:[#allocation2 + $0x5a0] sm:$0xff]
    %v817 = vld [vmem:[#allocation2 + $0x5a8] sm:$0xff]
    %v818 = vld [vmem:[#allocation2 + $0x5b0] sm:$0xff]
    %v819 = vld [vmem:[#allocation2 + $0x5b8] sm:$0xff]
    %v820 = vld [vmem:[#allocation2 + $0x5c0] sm:$0xff]
    %v821 = vld [vmem:[#allocation2 + $0x5c8] sm:$0xff]
    %v822 = vld [vmem:[#allocation2 + $0x5d0] sm:$0xff]
    %v823 = vld [vmem:[#allocation2 + $0x5d8] sm:$0xff]
    %v824 = vld [vmem:[#allocation2 + $0x5e0] sm:$0xff]
    %v825 = vld [vmem:[#allocation2 + $0x5e8] sm:$0xff]
    %v826 = vld [vmem:[#allocation2 + $0x5f0] sm:$0xff]
    %v827 = vld [vmem:[#allocation2 + $0x5f8] sm:$0xff]
    %v828 = vld [vmem:[#allocation2 + $0x600] sm:$0xff]
    %v829 = vld [vmem:[#allocation2 + $0x608] sm:$0xff]
    %v830 = vld [vmem:[#allocation2 + $0x610] sm:$0xff]
    %v831 = vld [vmem:[#allocation2 + $0x618] sm:$0xff]
    %v832 = vld [vmem:[#allocation2 + $0x620] sm:$0xff]
    %v833 = vld [vmem:[#allocation2 + $0x628] sm:$0xff]
    %v834 = vld [vmem:[#allocation2 + $0x630] sm:$0xff]
    %v835 = vld [vmem:[#allocation2 + $0x638] sm:$0xff]
    %v836 = vld [vmem:[#allocation2 + $0x640] sm:$0xff]
    %v837 = vld [vmem:[#allocation2 + $0x648] sm:$0xff]
    %v838 = vld [vmem:[#allocation2 + $0x650] sm:$0xff]
    %v839 = vld [vmem:[#allocation2 + $0x658] sm:$0xff]
    %v840 = vld [vmem:[#allocation2 + $0x660] sm:$0xff]
    %v841 = vld [vmem:[#allocation2 + $0x668] sm:$0xff]
    %v842 = vld [vmem:[#allocation2 + $0x670] sm:$0xff]
    %v843 = vld [vmem:[#allocation2 + $0x678] sm:$0xff]
    %v844 = vld [vmem:[#allocation2 + $0x680] sm:$0xff]
    %v845 = vld [vmem:[#allocation2 + $0x688] sm:$0xff]
    %v846 = vld [vmem:[#allocation2 + $0x690] sm:$0xff]
    %v847 = vld [vmem:[#allocation2 + $0x698] sm:$0xff]
    %v848 = vld [vmem:[#allocation2 + $0x6a0] sm:$0xff]
    %v849 = vld [vmem:[#allocation2 + $0x6a8] sm:$0xff]
    %v850 = vld [vmem:[#allocation2 + $0x6b0] sm:$0xff]
    %v851 = vld [vmem:[#allocation2 + $0x6b8] sm:$0xff]
    %v852 = vld [vmem:[#allocation2 + $0x6c0] sm:$0xff]
    %v853 = vld [vmem:[#allocation2 + $0x6c8] sm:$0xff]
    %v854 = vld [vmem:[#allocation2 + $0x6d0] sm:$0xff]
    %v855 = vld [vmem:[#allocation2 + $0x6d8] sm:$0xff]
    %v856 = vld [vmem:[#allocation2 + $0x6e0] sm:$0xff]
    %v857 = vld [vmem:[#allocation2 + $0x6e8] sm:$0xff]
    %v858 = vld [vmem:[#allocation2 + $0x6f0] sm:$0xff]
    %v859 = vld [vmem:[#allocation2 + $0x6f8] sm:$0xff]
    %v860 = vld [vmem:[#allocation2 + $0x700] sm:$0xff]
    %v861 = vld [vmem:[#allocation2 + $0x708] sm:$0xff]
    %v862 = vld [vmem:[#allocation2 + $0x710] sm:$0xff]
    %v863 = vld [vmem:[#allocation2 + $0x718] sm:$0xff]
    %v864 = vld [vmem:[#allocation2 + $0x720] sm:$0xff]
    %v865 = vld [vmem:[#allocation2 + $0x728] sm:$0xff]
    %v866 = vld [vmem:[#allocation2 + $0x730] sm:$0xff]
    %v867 = vld [vmem:[#allocation2 + $0x738] sm:$0xff]
    %v868 = vld [vmem:[#allocation2 + $0x740] sm:$0xff]
    %v869 = vld [vmem:[#allocation2 + $0x748] sm:$0xff]
    %v870 = vld [vmem:[#allocation2 + $0x750] sm:$0xff]
    %v871 = vld [vmem:[#allocation2 + $0x758] sm:$0xff]
    %v872 = vld [vmem:[#allocation2 + $0x760] sm:$0xff]
    %v873 = vld [vmem:[#allocation2 + $0x768] sm:$0xff]
    %v874 = vld [vmem:[#allocation2 + $0x770] sm:$0xff]
    %v875 = vld [vmem:[#allocation2 + $0x778] sm:$0xff]
    %v876 = vld [vmem:[#allocation2 + $0x780] sm:$0xff]
    %v877 = vld [vmem:[#allocation2 + $0x788] sm:$0xff]
    %v878 = vld [vmem:[#allocation2 + $0x790] sm:$0xff]
    %v879 = vld [vmem:[#allocation2 + $0x798] sm:$0xff]
    %v880 = vld [vmem:[#allocation2 + $0x7a0] sm:$0xff]
    %v881 = vld [vmem:[#allocation2 + $0x7a8] sm:$0xff]
    %v882 = vld [vmem:[#allocation2 + $0x7b0] sm:$0xff]
    %v883 = vld [vmem:[#allocation2 + $0x7b8] sm:$0xff]
    %v884 = vld [vmem:[#allocation2 + $0x7c0] sm:$0xff]
    %v885 = vld [vmem:[#allocation2 + $0x7c8] sm:$0xff]
    %v886 = vld [vmem:[#allocation2 + $0x7d0] sm:$0xff]
    %v887 = vld [vmem:[#allocation2 + $0x7d8] sm:$0xff]
    %v888 = vld [vmem:[#allocation2 + $0x7e0] sm:$0xff]
    %v889 = vld [vmem:[#allocation2 + $0x7e8] sm:$0xff]
    %v890 = vld [vmem:[#allocation2 + $0x7f0] sm:$0xff]
    %v891 = vld [vmem:[#allocation2 + $0x7f8] sm:$0xff]
    %892 = vmatprep.subr.mxu0 %v667
    %893 = vmatpush1.msra.mxu0 %v666
    %894 = vmatprep.subr.mxu0 %v665
    %895 = vmatpush1.msra.mxu0 %v664
    %896 = vmatprep.subr.mxu0 %v663
    %897 = vmatpush1.msra.mxu0 %v662
    %898 = vmatprep.subr.mxu0 %v661
    %899 = vmatpush1.msra.mxu0 %v660
    %900 = vmatprep.subr.mxu0 %v659
    %901 = vmatpush1.msra.mxu0 %v658
    %902 = vmatprep.subr.mxu0 %v657
    %903 = vmatpush1.msra.mxu0 %v656
    %904 = vmatprep.subr.mxu0 %v655
    %905 = vmatpush1.msra.mxu0 %v654
    %906 = vmatprep.subr.mxu0 %v653
    %907 = vmatpush1.msra.mxu0 %v652
    %908 = vmatprep.subr.mxu0 %v651
    %909 = vmatpush1.msra.mxu0 %v650
    %910 = vmatprep.subr.mxu0 %v649
    %911 = vmatpush1.msra.mxu0 %v648
    %912 = vmatprep.subr.mxu0 %v647
    %913 = vmatpush1.msra.mxu0 %v646
    %914 = vmatprep.subr.mxu0 %v645
    %915 = vmatpush1.msra.mxu0 %v644
    %916 = vmatprep.subr.mxu0 %v643
    %917 = vmatpush1.msra.mxu0 %v642
    %918 = vmatprep.subr.mxu0 %v641
    %919 = vmatpush1.msra.mxu0 %v640
    %920 = vmatprep.subr.mxu0 %v639
    %921 = vmatpush1.msra.mxu0 %v638
    %922 = vmatprep.subr.mxu0 %v637
    %923 = vmatpush1.msra.mxu0 %v636
    %924 = vmatprep.subr.mxu0 %v699
    %925 = vmatpush2.msra.mxu0 %v698
    %926 = vmatprep.subr.mxu0 %v697
    %927 = vmatpush2.msra.mxu0 %v696
    %928 = vmatprep.subr.mxu0 %v695
    %929 = vmatpush2.msra.mxu0 %v694
    %930 = vmatprep.subr.mxu0 %v693
    %931 = vmatpush2.msra.mxu0 %v692
    %932 = vmatprep.subr.mxu0 %v691
    %933 = vmatpush2.msra.mxu0 %v690
    %934 = vmatprep.subr.mxu0 %v689
    %935 = vmatpush2.msra.mxu0 %v688
    %936 = vmatprep.subr.mxu0 %v687
    %937 = vmatpush2.msra.mxu0 %v686
    %938 = vmatprep.subr.mxu0 %v685
    %939 = vmatpush2.msra.mxu0 %v684
    %940 = vmatprep.subr.mxu0 %v683
    %941 = vmatpush2.msra.mxu0 %v682
    %942 = vmatprep.subr.mxu0 %v681
    %943 = vmatpush2.msra.mxu0 %v680
    %944 = vmatprep.subr.mxu0 %v679
    %945 = vmatpush2.msra.mxu0 %v678
    %946 = vmatprep.subr.mxu0 %v677
    %947 = vmatpush2.msra.mxu0 %v676
    %948 = vmatprep.subr.mxu0 %v675
    %949 = vmatpush2.msra.mxu0 %v674
    %950 = vmatprep.subr.mxu0 %v673
    %951 = vmatpush2.msra.mxu0 %v672
    %952 = vmatprep.subr.mxu0 %v671
    %953 = vmatpush2.msra.mxu0 %v670
    %954 = vmatprep.subr.mxu0 %v669
    %955 = vmatpush2.msra.mxu0 %v668
    %956 = vmatprep.mubr.f32.mxu0 %v36
    %957 = vmatmul.mubr.f32.gmra.mxu0 %v35
    %v958 = vpop.f32.mrf.mxu0
    %v959 = vadd.f32 0.0, %v958
    %v960 = vpop.f32.mrf.mxu0
    %v961 = vadd.f32 0.0, %v960
    %962 = vmatprep.mubr.f32.mxu0 %v44
    %963 = vmatmul.mubr.f32.gmra.mxu0 %v43
    %v964 = vpop.f32.mrf.mxu0
    %v965 = vadd.f32 0.0, %v964
    %v966 = vpop.f32.mrf.mxu0
    %v967 = vadd.f32 0.0, %v966
    %968 = vdwg.mxu0
    %969 = vmatprep.subr.mxu0 %v731
    %970 = vmatpush1.msra.mxu0 %v730
    %971 = vmatprep.subr.mxu0 %v729
    %972 = vmatpush1.msra.mxu0 %v728
    %973 = vmatprep.subr.mxu0 %v727
    %974 = vmatpush1.msra.mxu0 %v726
    %975 = vmatprep.subr.mxu0 %v725
    %976 = vmatpush1.msra.mxu0 %v724
    %977 = vmatprep.subr.mxu0 %v723
    %978 = vmatpush1.msra.mxu0 %v722
    %979 = vmatprep.subr.mxu0 %v721
    %980 = vmatpush1.msra.mxu0 %v720
    %981 = vmatprep.subr.mxu0 %v719
    %982 = vmatpush1.msra.mxu0 %v718
    %983 = vmatprep.subr.mxu0 %v717
    %984 = vmatpush1.msra.mxu0 %v716
    %985 = vmatprep.subr.mxu0 %v715
    %986 = vmatpush1.msra.mxu0 %v714
    %987 = vmatprep.subr.mxu0 %v713
    %988 = vmatpush1.msra.mxu0 %v712
    %989 = vmatprep.subr.mxu0 %v711
    %990 = vmatpush1.msra.mxu0 %v710
    %991 = vmatprep.subr.mxu0 %v709
    %992 = vmatpush1.msra.mxu0 %v708
    %993 = vmatprep.subr.mxu0 %v707
    %994 = vmatpush1.msra.mxu0 %v706
    %995 = vmatprep.subr.mxu0 %v705
    %996 = vmatpush1.msra.mxu0 %v704
    %997 = vmatprep.subr.mxu0 %v703
    %998 = vmatpush1.msra.mxu0 %v702
    %999 = vmatprep.subr.mxu0 %v701
    %1000 = vmatpush1.msra.mxu0 %v700
    %1001 = vmatprep.subr.mxu0 %v763
    %1002 = vmatpush2.msra.mxu0 %v762
    %1003 = vmatprep.subr.mxu0 %v761
    %1004 = vmatpush2.msra.mxu0 %v760
    %1005 = vmatprep.subr.mxu0 %v759
    %1006 = vmatpush2.msra.mxu0 %v758
    %1007 = vmatprep.subr.mxu0 %v757
    %1008 = vmatpush2.msra.mxu0 %v756
    %1009 = vmatprep.subr.mxu0 %v755
    %1010 = vmatpush2.msra.mxu0 %v754
    %1011 = vmatprep.subr.mxu0 %v753
    %1012 = vmatpush2.msra.mxu0 %v752
    %1013 = vmatprep.subr.mxu0 %v751
    %1014 = vmatpush2.msra.mxu0 %v750
    %1015 = vmatprep.subr.mxu0 %v749
    %1016 = vmatpush2.msra.mxu0 %v748
    %1017 = vmatprep.subr.mxu0 %v747
    %1018 = vmatpush2.msra.mxu0 %v746
    %1019 = vmatprep.subr.mxu0 %v745
    %1020 = vmatpush2.msra.mxu0 %v744
    %1021 = vmatprep.subr.mxu0 %v743
    %1022 = vmatpush2.msra.mxu0 %v742
    %1023 = vmatprep.subr.mxu0 %v741
    %1024 = vmatpush2.msra.mxu0 %v740
    %1025 = vmatprep.subr.mxu0 %v739
    %1026 = vmatpush2.msra.mxu0 %v738
    %1027 = vmatprep.subr.mxu0 %v737
    %1028 = vmatpush2.msra.mxu0 %v736
    %1029 = vmatprep.subr.mxu0 %v735
    %1030 = vmatpush2.msra.mxu0 %v734
    %1031 = vmatprep.subr.mxu0 %v733
    %1032 = vmatpush2.msra.mxu0 %v732
    %1033 = vmatprep.mubr.f32.mxu0 %v38
    %1034 = vmatmul.mubr.f32.gmra.mxu0 %v37
    %v1035 = vpop.f32.mrf.mxu0
    %v1036 = vadd.f32 %v959, %v1035
    %v1037 = vpop.f32.mrf.mxu0
    %v1038 = vadd.f32 %v961, %v1037
    %1039 = vmatprep.mubr.f32.mxu0 %v46
    %1040 = vmatmul.mubr.f32.gmra.mxu0 %v45
    %v1041 = vpop.f32.mrf.mxu0
    %v1042 = vadd.f32 %v965, %v1041
    %v1043 = vpop.f32.mrf.mxu0
    %v1044 = vadd.f32 %v967, %v1043
    %1045 = vdwg.mxu0
    %1046 = vmatprep.subr.mxu0 %v795
    %1047 = vmatpush1.msra.mxu0 %v794
    %1048 = vmatprep.subr.mxu0 %v793
    %1049 = vmatpush1.msra.mxu0 %v792
    %1050 = vmatprep.subr.mxu0 %v791
    %1051 = vmatpush1.msra.mxu0 %v790
    %1052 = vmatprep.subr.mxu0 %v789
    %1053 = vmatpush1.msra.mxu0 %v788
    %1054 = vmatprep.subr.mxu0 %v787
    %1055 = vmatpush1.msra.mxu0 %v786
    %1056 = vmatprep.subr.mxu0 %v785
    %1057 = vmatpush1.msra.mxu0 %v784
    %1058 = vmatprep.subr.mxu0 %v783
    %1059 = vmatpush1.msra.mxu0 %v782
    %1060 = vmatprep.subr.mxu0 %v781
    %1061 = vmatpush1.msra.mxu0 %v780
    %1062 = vmatprep.subr.mxu0 %v779
    %1063 = vmatpush1.msra.mxu0 %v778
    %1064 = vmatprep.subr.mxu0 %v777
    %1065 = vmatpush1.msra.mxu0 %v776
    %1066 = vmatprep.subr.mxu0 %v775
    %1067 = vmatpush1.msra.mxu0 %v774
    %1068 = vmatprep.subr.mxu0 %v773
    %1069 = vmatpush1.msra.mxu0 %v772
    %1070 = vmatprep.subr.mxu0 %v771
    %1071 = vmatpush1.msra.mxu0 %v770
    %1072 = vmatprep.subr.mxu0 %v769
    %1073 = vmatpush1.msra.mxu0 %v768
    %1074 = vmatprep.subr.mxu0 %v767
    %1075 = vmatpush1.msra.mxu0 %v766
    %1076 = vmatprep.subr.mxu0 %v765
    %1077 = vmatpush1.msra.mxu0 %v764
    %1078 = vmatprep.subr.mxu0 %v827
    %1079 = vmatpush2.msra.mxu0 %v826
    %1080 = vmatprep.subr.mxu0 %v825
    %1081 = vmatpush2.msra.mxu0 %v824
    %1082 = vmatprep.subr.mxu0 %v823
    %1083 = vmatpush2.msra.mxu0 %v822
    %1084 = vmatprep.subr.mxu0 %v821
    %1085 = vmatpush2.msra.mxu0 %v820
    %1086 = vmatprep.subr.mxu0 %v819
    %1087 = vmatpush2.msra.mxu0 %v818
    %1088 = vmatprep.subr.mxu0 %v817
    %1089 = vmatpush2.msra.mxu0 %v816
    %1090 = vmatprep.subr.mxu0 %v815
    %1091 = vmatpush2.msra.mxu0 %v814
    %1092 = vmatprep.subr.mxu0 %v813
    %1093 = vmatpush2.msra.mxu0 %v812
    %1094 = vmatprep.subr.mxu0 %v811
    %1095 = vmatpush2.msra.mxu0 %v810
    %1096 = vmatprep.subr.mxu0 %v809
    %1097 = vmatpush2.msra.mxu0 %v808
    %1098 = vmatprep.subr.mxu0 %v807
    %1099 = vmatpush2.msra.mxu0 %v806
    %1100 = vmatprep.subr.mxu0 %v805
    %1101 = vmatpush2.msra.mxu0 %v804
    %1102 = vmatprep.subr.mxu0 %v803
    %1103 = vmatpush2.msra.mxu0 %v802
    %1104 = vmatprep.subr.mxu0 %v801
    %1105 = vmatpush2.msra.mxu0 %v800
    %1106 = vmatprep.subr.mxu0 %v799
    %1107 = vmatpush2.msra.mxu0 %v798
    %1108 = vmatprep.subr.mxu0 %v797
    %1109 = vmatpush2.msra.mxu0 %v796
    %1110 = vmatprep.mubr.f32.mxu0 %v40
    %1111 = vmatmul.mubr.f32.gmra.mxu0 %v39
    %v1112 = vpop.f32.mrf.mxu0
    %v1113 = vadd.f32 %v1036, %v1112
    %v1114 = vpop.f32.mrf.mxu0
    %v1115 = vadd.f32 %v1038, %v1114
    %1116 = vmatprep.mubr.f32.mxu0 %v48
    %1117 = vmatmul.mubr.f32.gmra.mxu0 %v47
    %v1118 = vpop.f32.mrf.mxu0
    %v1119 = vadd.f32 %v1042, %v1118
    %v1120 = vpop.f32.mrf.mxu0
    %v1121 = vadd.f32 %v1044, %v1120
    %1122 = vdwg.mxu0
    %1123 = vmatprep.subr.mxu0 %v859
    %1124 = vmatpush1.msra.mxu0 %v858
    %1125 = vmatprep.subr.mxu0 %v857
    %1126 = vmatpush1.msra.mxu0 %v856
    %1127 = vmatprep.subr.mxu0 %v855
    %1128 = vmatpush1.msra.mxu0 %v854
    %1129 = vmatprep.subr.mxu0 %v853
    %1130 = vmatpush1.msra.mxu0 %v852
    %1131 = vmatprep.subr.mxu0 %v851
    %1132 = vmatpush1.msra.mxu0 %v850
    %1133 = vmatprep.subr.mxu0 %v849
    %1134 = vmatpush1.msra.mxu0 %v848
    %1135 = vmatprep.subr.mxu0 %v847
    %1136 = vmatpush1.msra.mxu0 %v846
    %1137 = vmatprep.subr.mxu0 %v845
    %1138 = vmatpush1.msra.mxu0 %v844
    %1139 = vmatprep.subr.mxu0 %v843
    %1140 = vmatpush1.msra.mxu0 %v842
    %1141 = vmatprep.subr.mxu0 %v841
    %1142 = vmatpush1.msra.mxu0 %v840
    %1143 = vmatprep.subr.mxu0 %v839
    %1144 = vmatpush1.msra.mxu0 %v838
    %1145 = vmatprep.subr.mxu0 %v837
    %1146 = vmatpush1.msra.mxu0 %v836
    %1147 = vmatprep.subr.mxu0 %v835
    %1148 = vmatpush1.msra.mxu0 %v834
    %1149 = vmatprep.subr.mxu0 %v833
    %1150 = vmatpush1.msra.mxu0 %v832
    %1151 = vmatprep.subr.mxu0 %v831
    %1152 = vmatpush1.msra.mxu0 %v830
    %1153 = vmatprep.subr.mxu0 %v829
    %1154 = vmatpush1.msra.mxu0 %v828
    %1155 = vmatprep.subr.mxu0 %v891
    %1156 = vmatpush2.msra.mxu0 %v890
    %1157 = vmatprep.subr.mxu0 %v889
    %1158 = vmatpush2.msra.mxu0 %v888
    %1159 = vmatprep.subr.mxu0 %v887
    %1160 = vmatpush2.msra.mxu0 %v886
    %1161 = vmatprep.subr.mxu0 %v885
    %1162 = vmatpush2.msra.mxu0 %v884
    %1163 = vmatprep.subr.mxu0 %v883
    %1164 = vmatpush2.msra.mxu0 %v882
    %1165 = vmatprep.subr.mxu0 %v881
    %1166 = vmatpush2.msra.mxu0 %v880
    %1167 = vmatprep.subr.mxu0 %v879
    %1168 = vmatpush2.msra.mxu0 %v878
    %1169 = vmatprep.subr.mxu0 %v877
    %1170 = vmatpush2.msra.mxu0 %v876
    %1171 = vmatprep.subr.mxu0 %v875
    %1172 = vmatpush2.msra.mxu0 %v874
    %1173 = vmatprep.subr.mxu0 %v873
    %1174 = vmatpush2.msra.mxu0 %v872
    %1175 = vmatprep.subr.mxu0 %v871
    %1176 = vmatpush2.msra.mxu0 %v870
    %1177 = vmatprep.subr.mxu0 %v869
    %1178 = vmatpush2.msra.mxu0 %v868
    %1179 = vmatprep.subr.mxu0 %v867
    %1180 = vmatpush2.msra.mxu0 %v866
    %1181 = vmatprep.subr.mxu0 %v865
    %1182 = vmatpush2.msra.mxu0 %v864
    %1183 = vmatprep.subr.mxu0 %v863
    %1184 = vmatpush2.msra.mxu0 %v862
    %1185 = vmatprep.subr.mxu0 %v861
    %1186 = vmatpush2.msra.mxu0 %v860
    %1187 = vmatprep.mubr.f32.mxu0 %v42
    %1188 = vmatmul.mubr.f32.gmra.mxu0 %v41
    %v1189 = vpop.f32.mrf.mxu0
    %v1190 = vadd.f32 %v1113, %v1189
    %v1191 = vpop.f32.mrf.mxu0
    %v1192 = vadd.f32 %v1115, %v1191
    %1193 = vmatprep.mubr.f32.mxu0 %v50
    %1194 = vmatmul.mubr.f32.gmra.mxu0 %v49
    %v1195 = vpop.f32.mrf.mxu0
    %v1196 = vadd.f32 %v1119, %v1195
    %v1197 = vpop.f32.mrf.mxu0
    %v1198 = vadd.f32 %v1121, %v1197
    %1199 = vdwg.mxu0
    %v1200 = vld [vmem:[%s2] sm:$0x3]
    %v1202 = vlaneseq
    %v1203 = vshrl.u32 %v1202, 7
    %v1204 = vsub.s32 0, %v1203
    %v1205 = vrot.slane %v1200, %v1204
    %v1206 = vlaneseq
    %v1207 = vshrl.u32 %v1206, 7
    %v1208 = vsub.s32 1, %v1207
    %v1209 = vrot.slane %v1200, %v1208
    %v1213 = vsel %vm613, %v634, 0
    %1215 = vmatprep.subr.mxu0 0.0
    %1216 = vmatpush1.msra.mxu0 0.0
    %1217 = vmatprep.subr.mxu0 0.0
    %1218 = vmatpush1.msra.mxu0 0.0
    %1219 = vmatprep.subr.mxu0 0.0
    %1220 = vmatpush1.msra.mxu0 0.0
    %1221 = vmatprep.subr.mxu0 0.0
    %1222 = vmatpush1.msra.mxu0 0.0
    %1223 = vmatprep.subr.mxu0 0.0
    %1224 = vmatpush1.msra.mxu0 0.0
    %1225 = vmatprep.subr.mxu0 0.0
    %1226 = vmatpush1.msra.mxu0 0.0
    %1227 = vmatprep.subr.mxu0 0.0
    %1228 = vmatpush1.msra.mxu0 0.0
    %1229 = vmatprep.subr.mxu0 0.0
    %1230 = vmatpush1.msra.mxu0 0.0
    %1231 = vmatprep.subr.mxu0 0.0
    %1232 = vmatpush1.msra.mxu0 0.0
    %1233 = vmatprep.subr.mxu0 0.0
    %1234 = vmatpush1.msra.mxu0 0.0
    %1235 = vmatprep.subr.mxu0 0.0
    %1236 = vmatpush1.msra.mxu0 0.0
    %1237 = vmatprep.subr.mxu0 0.0
    %1238 = vmatpush1.msra.mxu0 0.0
    %1239 = vmatprep.subr.mxu0 0.0
    %1240 = vmatpush1.msra.mxu0 0.0
    %1241 = vmatprep.subr.mxu0 0.0
    %1242 = vmatpush1.msra.mxu0 0.0
    %1243 = vmatprep.subr.mxu0 0.0
    %1244 = vmatpush1.msra.mxu0 0.0
    %1245 = vmatprep.subr.mxu0 %v1192
    %1246 = vmatpush1.msra.mxu0 %v1190
    %1247 = vmatprep.subr.mxu0 0.0
    %1248 = vmatpush2.msra.mxu0 0.0
    %1249 = vmatprep.subr.mxu0 0.0
    %1250 = vmatpush2.msra.mxu0 0.0
    %1251 = vmatprep.subr.mxu0 0.0
    %1252 = vmatpush2.msra.mxu0 0.0
    %1253 = vmatprep.subr.mxu0 0.0
    %1254 = vmatpush2.msra.mxu0 0.0
    %1255 = vmatprep.subr.mxu0 0.0
    %1256 = vmatpush2.msra.mxu0 0.0
    %1257 = vmatprep.subr.mxu0 0.0
    %1258 = vmatpush2.msra.mxu0 0.0
    %1259 = vmatprep.subr.mxu0 0.0
    %1260 = vmatpush2.msra.mxu0 0.0
    %1261 = vmatprep.subr.mxu0 0.0
    %1262 = vmatpush2.msra.mxu0 0.0
    %1263 = vmatprep.subr.mxu0 0.0
    %1264 = vmatpush2.msra.mxu0 0.0
    %1265 = vmatprep.subr.mxu0 0.0
    %1266 = vmatpush2.msra.mxu0 0.0
    %1267 = vmatprep.subr.mxu0 0.0
    %1268 = vmatpush2.msra.mxu0 0.0
    %1269 = vmatprep.subr.mxu0 0.0
    %1270 = vmatpush2.msra.mxu0 0.0
    %1271 = vmatprep.subr.mxu0 0.0
    %1272 = vmatpush2.msra.mxu0 0.0
    %1273 = vmatprep.subr.mxu0 0.0
    %1274 = vmatpush2.msra.mxu0 0.0
    %1275 = vmatprep.subr.mxu0 0.0
    %1276 = vmatpush2.msra.mxu0 0.0
    %1277 = vmatprep.subr.mxu0 0.0
    %1278 = vmatpush2.msra.mxu0 0.0
    %1279 = vmatprep.mubr.f32.mxu0 0.0
    %1280 = vmatmul.mubr.f32.gmra.mxu0 %v1213
    %v1281 = vpop.f32.mrf.mxu0
    %v1282 = vadd.f32 %v1205, %v1281
    %v1283 = vpop.f32.mrf.mxu0
    %v1284 = vadd.f32 %v1209, %v1283
    %1285 = vdwg.mxu0
    %v1287 = vsel %vm613, %v635, 0
    %1289 = vmatprep.subr.mxu0 0.0
    %1290 = vmatpush1.msra.mxu0 0.0
    %1291 = vmatprep.subr.mxu0 0.0
    %1292 = vmatpush1.msra.mxu0 0.0
    %1293 = vmatprep.subr.mxu0 0.0
    %1294 = vmatpush1.msra.mxu0 0.0
    %1295 = vmatprep.subr.mxu0 0.0
    %1296 = vmatpush1.msra.mxu0 0.0
    %1297 = vmatprep.subr.mxu0 0.0
    %1298 = vmatpush1.msra.mxu0 0.0
    %1299 = vmatprep.subr.mxu0 0.0
    %1300 = vmatpush1.msra.mxu0 0.0
    %1301 = vmatprep.subr.mxu0 0.0
    %1302 = vmatpush1.msra.mxu0 0.0
    %1303 = vmatprep.subr.mxu0 0.0
    %1304 = vmatpush1.msra.mxu0 0.0
    %1305 = vmatprep.subr.mxu0 0.0
    %1306 = vmatpush1.msra.mxu0 0.0
    %1307 = vmatprep.subr.mxu0 0.0
    %1308 = vmatpush1.msra.mxu0 0.0
    %1309 = vmatprep.subr.mxu0 0.0
    %1310 = vmatpush1.msra.mxu0 0.0
    %1311 = vmatprep.subr.mxu0 0.0
    %1312 = vmatpush1.msra.mxu0 0.0
    %1313 = vmatprep.subr.mxu0 0.0
    %1314 = vmatpush1.msra.mxu0 0.0
    %1315 = vmatprep.subr.mxu0 0.0
    %1316 = vmatpush1.msra.mxu0 0.0
    %1317 = vmatprep.subr.mxu0 0.0
    %1318 = vmatpush1.msra.mxu0 0.0
    %1319 = vmatprep.subr.mxu0 %v1198
    %1320 = vmatpush1.msra.mxu0 %v1196
    %1321 = vmatprep.subr.mxu0 0.0
    %1322 = vmatpush2.msra.mxu0 0.0
    %1323 = vmatprep.subr.mxu0 0.0
    %1324 = vmatpush2.msra.mxu0 0.0
    %1325 = vmatprep.subr.mxu0 0.0
    %1326 = vmatpush2.msra.mxu0 0.0
    %1327 = vmatprep.subr.mxu0 0.0
    %1328 = vmatpush2.msra.mxu0 0.0
    %1329 = vmatprep.subr.mxu0 0.0
    %1330 = vmatpush2.msra.mxu0 0.0
    %1331 = vmatprep.subr.mxu0 0.0
    %1332 = vmatpush2.msra.mxu0 0.0
    %1333 = vmatprep.subr.mxu0 0.0
    %1334 = vmatpush2.msra.mxu0 0.0
    %1335 = vmatprep.subr.mxu0 0.0
    %1336 = vmatpush2.msra.mxu0 0.0
    %1337 = vmatprep.subr.mxu0 0.0
    %1338 = vmatpush2.msra.mxu0 0.0
    %1339 = vmatprep.subr.mxu0 0.0
    %1340 = vmatpush2.msra.mxu0 0.0
    %1341 = vmatprep.subr.mxu0 0.0
    %1342 = vmatpush2.msra.mxu0 0.0
    %1343 = vmatprep.subr.mxu0 0.0
    %1344 = vmatpush2.msra.mxu0 0.0
    %1345 = vmatprep.subr.mxu0 0.0
    %1346 = vmatpush2.msra.mxu0 0.0
    %1347 = vmatprep.subr.mxu0 0.0
    %1348 = vmatpush2.msra.mxu0 0.0
    %1349 = vmatprep.subr.mxu0 0.0
    %1350 = vmatpush2.msra.mxu0 0.0
    %1351 = vmatprep.subr.mxu0 0.0
    %1352 = vmatpush2.msra.mxu0 0.0
    %1353 = vmatprep.mubr.f32.mxu0 0.0
    %1354 = vmatmul.mubr.f32.gmra.mxu0 %v1287
    %v1355 = vpop.f32.mrf.mxu0
    %v1356 = vadd.f32 %v1205, %v1355
    %v1357 = vpop.f32.mrf.mxu0
    %v1358 = vadd.f32 %v1209, %v1357
    %1359 = vdwg.mxu0
    %v1360 = vmax.f32 %v1282, 0.0
    %v1361 = vmax.f32 %v1284, 0.0
    %v1362 = vmax.f32 %v1356, 0.0
    %v1363 = vmax.f32 %v1358, 0.0
    %v1364 = vsel %vm613, %v634, 0.0
    %v1365 = vrot.slane %v1364, 4
    %v1366 = vadd.f32 %v1364, %v1365
    %v1367 = vrot.slane %v1366, 2
    %v1368 = vadd.f32 %v1366, %v1367
    %v1369 = vrot.slane %v1368, 1
    %v1370 = vadd.f32 %v1368, %v1369
    %v1371 = vsel %vm613, %v635, 0.0
    %v1372 = vrot.slane %v1371, 4
    %v1373 = vadd.f32 %v1371, %v1372
    %v1374 = vrot.slane %v1373, 2
    %v1375 = vadd.f32 %v1373, %v1374
    %v1376 = vrot.slane %v1375, 1
    %v1377 = vadd.f32 %v1375, %v1376
    %v1378 = vmul.f32 %v1370, 0.125
    %v1379 = vmul.f32 %v1377, 0.125
    %1381 = vbcast.lane.b32.xlu0 %v1378, 256
    %v1382 = vpop.permute.xlu0 %1381
    %1384 = vbcast.lane.b32.xlu0 %v1379, 256
    %v1385 = vpop.permute.xlu0 %1384
    %v1386 = vmul.f32 %v1382, %v1360
    %v1387 = vmul.f32 %v1382, %v1361
    %v1388 = vmul.f32 %v1385, %v1362
    %v1389 = vmul.f32 %v1385, %v1363
    %v1390 = vrot.slane %v1386, 4
    %v1391 = vadd.f32 %v1386, %v1390
    %v1392 = vrot.slane %v1391, 2
    %v1393 = vadd.f32 %v1391, %v1392
    %v1394 = vrot.slane %v1393, 1
    %v1395 = vadd.f32 %v1393, %v1394
    %v1396 = vrot.slane %v1387, 4
    %v1397 = vadd.f32 %v1387, %v1396
    %v1398 = vrot.slane %v1397, 2
    %v1399 = vadd.f32 %v1397, %v1398
    %v1400 = vrot.slane %v1399, 1
    %v1401 = vadd.f32 %v1399, %v1400
    %v1402 = vrot.slane %v1388, 4
    %v1403 = vadd.f32 %v1388, %v1402
    %v1404 = vrot.slane %v1403, 2
    %v1405 = vadd.f32 %v1403, %v1404
    %v1406 = vrot.slane %v1405, 1
    %v1407 = vadd.f32 %v1405, %v1406
    %v1408 = vrot.slane %v1389, 4
    %v1409 = vadd.f32 %v1389, %v1408
    %v1410 = vrot.slane %v1409, 2
    %v1411 = vadd.f32 %v1409, %v1410
    %v1412 = vrot.slane %v1411, 1
    %v1413 = vadd.f32 %v1411, %v1412
    %v1414 = vld [vmem:[%s3] sm:$0xff]
    %v1415 = vld [vmem:[%s3 + $0x8] sm:$0xff]
    %v1416 = vld [vmem:[%s3 + $0x10] sm:$0xff]
    %v1417 = vld [vmem:[%s3 + $0x18] sm:$0xff]
    %v1418 = vld [vmem:[%s3 + $0x20] sm:$0xff]
    %v1419 = vld [vmem:[%s3 + $0x28] sm:$0xff]
    %v1420 = vld [vmem:[%s3 + $0x30] sm:$0xff]
    %v1421 = vld [vmem:[%s3 + $0x38] sm:$0xff]
    %v1422 = vld [vmem:[%s3 + $0x40] sm:$0xff]
    %v1423 = vld [vmem:[%s3 + $0x48] sm:$0xff]
    %v1424 = vld [vmem:[%s3 + $0x50] sm:$0xff]
    %v1425 = vld [vmem:[%s3 + $0x58] sm:$0xff]
    %v1426 = vld [vmem:[%s3 + $0x60] sm:$0xff]
    %v1427 = vld [vmem:[%s3 + $0x68] sm:$0xff]
    %v1428 = vld [vmem:[%s3 + $0x70] sm:$0xff]
    %v1429 = vld [vmem:[%s3 + $0x78] sm:$0xff]
    %v1430 = vld [vmem:[%s3 + $0x80] sm:$0xff]
    %v1431 = vld [vmem:[%s3 + $0x88] sm:$0xff]
    %v1432 = vld [vmem:[%s3 + $0x90] sm:$0xff]
    %v1433 = vld [vmem:[%s3 + $0x98] sm:$0xff]
    %v1434 = vld [vmem:[%s3 + $0xa0] sm:$0xff]
    %v1435 = vld [vmem:[%s3 + $0xa8] sm:$0xff]
    %v1436 = vld [vmem:[%s3 + $0xb0] sm:$0xff]
    %v1437 = vld [vmem:[%s3 + $0xb8] sm:$0xff]
    %v1438 = vld [vmem:[%s3 + $0xc0] sm:$0xff]
    %v1439 = vld [vmem:[%s3 + $0xc8] sm:$0xff]
    %v1440 = vld [vmem:[%s3 + $0xd0] sm:$0xff]
    %v1441 = vld [vmem:[%s3 + $0xd8] sm:$0xff]
    %v1442 = vld [vmem:[%s3 + $0xe0] sm:$0xff]
    %v1443 = vld [vmem:[%s3 + $0xe8] sm:$0xff]
    %v1444 = vld [vmem:[%s3 + $0xf0] sm:$0xff]
    %v1445 = vld [vmem:[%s3 + $0xf8] sm:$0xff]
    %v1446 = vld [vmem:[%s4] sm:$0x1]
    %v1448 = vlaneseq
    %v1449 = vshrl.u32 %v1448, 7
    %v1450 = vsub.s32 0, %v1449
    %v1451 = vrot.slane %v1446, %v1450
    %vm1457 = vcmask 1041409
    %v1458 = vsel %vm1457, %v1407, %v1395
    %v1459 = vsel %vm1457, %v1413, %v1401
    %1462 = vmatprep.subr.mxu0 0.0
    %1463 = vmatpush1.msra.mxu0 %v1429
    %1464 = vmatprep.subr.mxu0 0.0
    %1465 = vmatpush1.msra.mxu0 %v1428
    %1466 = vmatprep.subr.mxu0 0.0
    %1467 = vmatpush1.msra.mxu0 %v1427
    %1468 = vmatprep.subr.mxu0 0.0
    %1469 = vmatpush1.msra.mxu0 %v1426
    %1470 = vmatprep.subr.mxu0 0.0
    %1471 = vmatpush1.msra.mxu0 %v1425
    %1472 = vmatprep.subr.mxu0 0.0
    %1473 = vmatpush1.msra.mxu0 %v1424
    %1474 = vmatprep.subr.mxu0 0.0
    %1475 = vmatpush1.msra.mxu0 %v1423
    %1476 = vmatprep.subr.mxu0 0.0
    %1477 = vmatpush1.msra.mxu0 %v1422
    %1478 = vmatprep.subr.mxu0 0.0
    %1479 = vmatpush1.msra.mxu0 %v1421
    %1480 = vmatprep.subr.mxu0 0.0
    %1481 = vmatpush1.msra.mxu0 %v1420
    %1482 = vmatprep.subr.mxu0 0.0
    %1483 = vmatpush1.msra.mxu0 %v1419
    %1484 = vmatprep.subr.mxu0 0.0
    %1485 = vmatpush1.msra.mxu0 %v1418
    %1486 = vmatprep.subr.mxu0 0.0
    %1487 = vmatpush1.msra.mxu0 %v1417
    %1488 = vmatprep.subr.mxu0 0.0
    %1489 = vmatpush1.msra.mxu0 %v1416
    %1490 = vmatprep.subr.mxu0 0.0
    %1491 = vmatpush1.msra.mxu0 %v1415
    %1492 = vmatprep.subr.mxu0 0.0
    %1493 = vmatpush1.msra.mxu0 %v1414
    %1494 = vmatprep.subr.mxu0 0.0
    %1495 = vmatpush2.msra.mxu0 %v1445
    %1496 = vmatprep.subr.mxu0 0.0
    %1497 = vmatpush2.msra.mxu0 %v1444
    %1498 = vmatprep.subr.mxu0 0.0
    %1499 = vmatpush2.msra.mxu0 %v1443
    %1500 = vmatprep.subr.mxu0 0.0
    %1501 = vmatpush2.msra.mxu0 %v1442
    %1502 = vmatprep.subr.mxu0 0.0
    %1503 = vmatpush2.msra.mxu0 %v1441
    %1504 = vmatprep.subr.mxu0 0.0
    %1505 = vmatpush2.msra.mxu0 %v1440
    %1506 = vmatprep.subr.mxu0 0.0
    %1507 = vmatpush2.msra.mxu0 %v1439
    %1508 = vmatprep.subr.mxu0 0.0
    %1509 = vmatpush2.msra.mxu0 %v1438
    %1510 = vmatprep.subr.mxu0 0.0
    %1511 = vmatpush2.msra.mxu0 %v1437
    %1512 = vmatprep.subr.mxu0 0.0
    %1513 = vmatpush2.msra.mxu0 %v1436
    %1514 = vmatprep.subr.mxu0 0.0
    %1515 = vmatpush2.msra.mxu0 %v1435
    %1516 = vmatprep.subr.mxu0 0.0
    %1517 = vmatpush2.msra.mxu0 %v1434
    %1518 = vmatprep.subr.mxu0 0.0
    %1519 = vmatpush2.msra.mxu0 %v1433
    %1520 = vmatprep.subr.mxu0 0.0
    %1521 = vmatpush2.msra.mxu0 %v1432
    %1522 = vmatprep.subr.mxu0 0.0
    %1523 = vmatpush2.msra.mxu0 %v1431
    %1524 = vmatprep.subr.mxu0 0.0
    %1525 = vmatpush2.msra.mxu0 %v1430
    %1526 = vmatprep.mubr.f32.mxu0 %v1459
    %1527 = vmatmul.mubr.f32.gmra.mxu0 %v1458
    %v1528 = vpop.f32.mrf.mxu0
    %v1529 = vadd.f32 %v1451, %v1528
    %v1530 = vpop.f32.mrf.mxu0
    %1531 = vdwg.mxu0
    %vm1532 = vcmask 91136
    %1533 = vst.msk [vmem:[#allocation5] sm:$0x3] %vm1532, %v1529
    // Predicated region
    $region26: #{tpu_custom_call.1} parent=1 // pred_check
      _
    $region27: #{tpu_custom_call.1} parent=1 // pred_check_branch
      %1535 = sbr.rel (0) target = $region29
    $region28: #{tpu_custom_call.1} parent=1 // pred_region
      %s1537 = ssub.s32 32, 32
      %1538 = vsyncadd [#allocation4], %s1537
      %s1540 = sshll.u32 [#allocation5], 4
      %s1541 = int_to_ptr.vmem [resolvable:$true] %s1540
      %1543 = dma.vmem_to_hbm [thread:$0]  %s1541, 32, %s5, [#allocation4]
    $region29: #{tpu_custom_call.1} parent=1 // pred_fallthru
      _
    // Predicated region
    $region30: #{tpu_custom_call.1} parent=1 // pred_check
      _
    $region31: #{tpu_custom_call.1} parent=1 // pred_check_branch
      %1545 = sbr.rel (0) target = $region33
    $region32: #{tpu_custom_call.1} parent=1 // pred_region
      %1546 = dma.done [#allocation4], 32
    $region33: #{tpu_custom_call.1} parent=1 // pred_fallthru
      _
    %1547 = vsyncpa [#allocation3], 1
    %1548 = vsyncpa [#allocation4], 1

</llo_original>
